<compile_context>
chip_gen: v7x
topology: tpu7x:2x2x1
jax: 0.10.0
libtpu: 0.0.40
codegen_flags: <defaults>
</compile_context>

<pallas_src>
import functools

import jax
import jax.numpy as jnp
from jax.experimental import pallas as pl
from jax.experimental.pallas import tpu as pltpu


# -----------------------------------------------------------------------------
# Fused kernel: SMEM-token row gather + LSTM recurrence + FC + log_softmax.
# -----------------------------------------------------------------------------
def _net_kernel(tok_ref, slab_ref, fc_ref, out_ref, hs_scr):
    # tok_ref : SMEM (T,)          int32  token ids (scalar prefetch)
    # slab_ref: VMEM (V_pad+H, 4H) f32    rows [0,V): emb @ W_ih + b_lstm
    #                                     rows [V_pad, V_pad+H): W_hh
    # fc_ref  : VMEM (H+1, C)      f32    rows [0,H): W_fc, row H: b_fc
    # out_ref : VMEM (T, C)        f32    log_softmax(logits)
    # hs_scr  : VMEM (T, H)        f32    hidden-state slab
    T, H = hs_scr.shape
    V_pad = slab_ref.shape[0] - H

    w_hh = slab_ref[pl.ds(V_pad, H), :]            # (H,4H), static aligned slice

    h = jnp.zeros((1, H), jnp.float32)
    c = jnp.zeros((1, H), jnp.float32)

    # Fully unrolled recurrence (T small & static).  Serial path per step is
    # one (1,H)x(H,4H) f32 matmul + two full-width transcendental passes; the
    # row gather and the hs store are off the critical path.
    # TODO(synk): switch to lax.fori_loop(..., unroll=True) if T grows large.
    for t in range(T):
        gx = slab_ref[pl.ds(tok_ref[t], 1), :]     # (1,4H): x_t @ W_ih + bias
        g = gx + jnp.dot(h, w_hh, preferred_element_type=jnp.float32)
        sg = jax.nn.sigmoid(g)                     # full-width (1,4H) sigmoid
        th = jnp.tanh(g)                           # full-width (1,4H) tanh
        c = sg[:, H:2 * H] * c + sg[:, 0:H] * th[:, 2 * H:3 * H]   # f*c + i*g
        h = sg[:, 3 * H:4 * H] * jnp.tanh(c)                        # o*tanh(c)
        hs_scr[pl.ds(t, 1), :] = h                 # static offset, not on chain

    # ---- FC + row-wise log_softmax, single output writeback ------------------
    hs = hs_scr[...]                               # (T,H)
    w_fc = fc_ref[pl.ds(0, H), :]                  # (H,C)
    b_fc = fc_ref[pl.ds(H, 1), :]                  # (1,C)
    logits = jnp.dot(hs, w_fc, preferred_element_type=jnp.float32) + b_fc
    m = jnp.max(logits, axis=1, keepdims=True)
    z = logits - m
    out_ref[...] = z - jnp.log(jnp.sum(jnp.exp(z), axis=1, keepdims=True))


# -----------------------------------------------------------------------------
# Full Net.forward (single pallas_call, single grid point)
# -----------------------------------------------------------------------------
@functools.partial(jax.jit, static_argnames=("hidden_dim",))
def net_forward(s, params, hidden_dim):
    tok = s.reshape(-1).astype(jnp.int32)          # s.view(-1)
    T = int(tok.shape[0])
    H = hidden_dim
    V = params["embedding"].shape[0]
    C = params["w_fc"].shape[1]

    # Weights-only precompute: embedding lookup + input projection + LSTM bias
    # collapse into a single (V,4H) table.  Pad V to a sublane multiple so the
    # W_hh block starts at an aligned row inside the merged slab.
    emb_proj = params["embedding"] @ params["w_ih"] + params["b_lstm"]      # (V,4H)
    V_pad = -(-V // 8) * 8
    slab = jnp.concatenate(
        [jnp.pad(emb_proj, ((0, V_pad - V), (0, 0))), params["w_hh"]], axis=0)
    fc_slab = jnp.concatenate([params["w_fc"], params["b_fc"]], axis=0)     # (H+1,C)

    grid_spec = pltpu.PrefetchScalarGridSpec(
        num_scalar_prefetch=1,                      # tok -> SMEM
        grid=(1,),
        in_specs=[
            pl.BlockSpec((V_pad + H, 4 * H), lambda i, _tok: (0, 0)),
            pl.BlockSpec((H + 1, C), lambda i, _tok: (0, 0)),
        ],
        out_specs=pl.BlockSpec((T, C), lambda i, _tok: (0, 0)),
        scratch_shapes=[pltpu.VMEM((T, H), jnp.float32)],
    )
    return pl.pallas_call(
        _net_kernel,
        out_shape=jax.ShapeDtypeStruct((T, C), jnp.float32),
        grid_spec=grid_spec,
        compiler_params=pltpu.CompilerParams(dimension_semantics=("arbitrary",)),
    )(tok, slab, fc_slab)


# Pure-JAX reference for a correctness check.
def net_forward_ref(s, params, hidden_dim):
    tok = s.reshape(-1)
    emb = jnp.take(params["embedding"], tok, axis=0)
    H = hidden_dim

    def step(carry, x_t):
        h, c = carry
        gates = x_t @ params["w_ih"] + h @ params["w_hh"] + params["b_lstm"][0]
        i = jax.nn.sigmoid(gates[0 * H:1 * H])
        f = jax.nn.sigmoid(gates[1 * H:2 * H])
        g = jnp.tanh(gates[2 * H:3 * H])
        o = jax.nn.sigmoid(gates[3 * H:4 * H])
        c = f * c + i * g
        h = o * jnp.tanh(c)
        return (h, c), h

    init = (jnp.zeros((H,), jnp.float32), jnp.zeros((H,), jnp.float32))
    _, hs = jax.lax.scan(step, init, emb)
    logits = hs @ params["w_fc"] + params["b_fc"][0]
    return jax.nn.log_softmax(logits, axis=1)


def init_params(key, vocab_size, embedding_dim, hidden_dim, num_tags):
    ks = jax.random.split(key, 7)
    bound = 1.0 / jnp.sqrt(hidden_dim)
    u = lambda k, shape, b: jax.random.uniform(k, shape, jnp.float32, -b, b)
    return {
        "embedding": jax.random.normal(ks[0], (vocab_size, embedding_dim), jnp.float32),
        # stored transposed relative to PyTorch: (E, 4H), (H, 4H); gate order i,f,g,o
        "w_ih": u(ks[1], (embedding_dim, 4 * hidden_dim), bound),
        "w_hh": u(ks[2], (hidden_dim, 4 * hidden_dim), bound),
        # combined b_ih + b_hh, kept 2D
        "b_lstm": u(ks[3], (1, 4 * hidden_dim), bound) + u(ks[4], (1, 4 * hidden_dim), bound),
        "w_fc": u(ks[5], (hidden_dim, num_tags), bound),
        "b_fc": u(ks[6], (1, num_tags), bound),
    }


if __name__ == "__main__":
    VOCAB = 50
    EMB = 32
    HIDDEN = 32
    TAGS = 5
    BATCH, SEQ = 2, 8     # flattened -> T = 16 timesteps

    key = jax.random.PRNGKey(0)
    pkey, skey = jax.random.split(key)
    params = init_params(pkey, VOCAB, EMB, HIDDEN, TAGS)
    s = jax.random.randint(skey, (BATCH, SEQ), 0, VOCAB, dtype=jnp.int32)

    out = net_forward(s, params, HIDDEN)
    out = jax.block_until_ready(out)

    ref = net_forward_ref(s, params, HIDDEN)
    assert out.shape == (BATCH * SEQ, TAGS)
    assert jnp.allclose(out, ref, atol=1e-3, rtol=1e-3), "mismatch vs reference"

    print("KERNEL_OK")
</pallas_src>

<mosaic_0001>
module attributes {stable_mosaic.version = 11 : i64} {
  func.func @_net_kernel(%arg0: i32, %arg1: memref<16xi32, #tpu.memory_space<smem>>, %arg2: memref<88x128xf32, #tpu.memory_space<vmem>>, %arg3: memref<33x5xf32, #tpu.memory_space<vmem>>, %arg4: memref<16x5xf32, #tpu.memory_space<vmem>>, %arg5: memref<16x32xf32, #tpu.memory_space<vmem>>) attributes {dimension_semantics = [#tpu.dimension_semantics<arbitrary>], iteration_bounds = array<i64: 1>, scalar_prefetch = 1 : i64, scratch_operands = 1 : i64, tpu.core_type = #tpu.core_type<tc>, window_params = [{pipeline_mode = #tpu.pipeline_mode<synchronous>, transform_indices = @transform_0, window_bounds = array<i64: 88, 128>}, {pipeline_mode = #tpu.pipeline_mode<synchronous>, transform_indices = @transform_1, window_bounds = array<i64: 33, 5>}, {pipeline_mode = #tpu.pipeline_mode<synchronous>, transform_indices = @transform_2, window_bounds = array<i64: 16, 5>}]} {
    %c56 = arith.constant 56 : index
    %c0 = arith.constant 0 : index
    %0 = vector.load %arg2[%c56, %c0] : memref<88x128xf32, #tpu.memory_space<vmem>>, vector<32x128xf32>
    %cst = arith.constant 0.000000e+00 : f32
    %1 = vector.broadcast %cst : f32 to vector<1x32xf32>
    %cst_0 = arith.constant 0.000000e+00 : f32
    %2 = vector.broadcast %cst_0 : f32 to vector<1x32xf32>
    %c0_1 = arith.constant 0 : index
    %3 = memref.load %arg1[%c0_1] : memref<16xi32, #tpu.memory_space<smem>>
    %4 = arith.index_cast %3 : i32 to index
    %c0_2 = arith.constant 0 : index
    %5 = vector.load %arg2[%4, %c0_2] : memref<88x128xf32, #tpu.memory_space<vmem>>, vector<1x128xf32>
    %cst_3 = arith.constant dense<0.000000e+00> : vector<1x128xf32>
    %6 = tpu.matmul %1, %0, %cst_3 {dimension_numbers = #tpu.dot_dimension_numbers<[1], [0], [0], [1], [0, 0, 1, 1], [], []>} : vector<1x32xf32>, vector<32x128xf32>, vector<1x128xf32> -> vector<1x128xf32>
    %7 = arith.addf %5, %6 : vector<1x128xf32>
    %8 = arith.negf %7 : vector<1x128xf32>
    %9 = math.exp %8 : vector<1x128xf32>
    %cst_4 = arith.constant 1.000000e+00 : f32
    %10 = vector.broadcast %cst_4 : f32 to vector<1x128xf32>
    %11 = arith.addf %10, %9 : vector<1x128xf32>
    %12 = arith.divf %10, %11 : vector<1x128xf32>
    %13 = math.tanh %7 : vector<1x128xf32>
    %14 = vector.extract_strided_slice %12 {offsets = [0, 32], sizes = [1, 32], strides = [1, 1]} : vector<1x128xf32> to vector<1x32xf32>
    %15 = arith.mulf %14, %2 : vector<1x32xf32>
    %16 = vector.extract_strided_slice %12 {offsets = [0, 0], sizes = [1, 32], strides = [1, 1]} : vector<1x128xf32> to vector<1x32xf32>
    %17 = vector.extract_strided_slice %13 {offsets = [0, 64], sizes = [1, 32], strides = [1, 1]} : vector<1x128xf32> to vector<1x32xf32>
    %18 = arith.mulf %16, %17 : vector<1x32xf32>
    %19 = arith.addf %15, %18 : vector<1x32xf32>
    %20 = vector.extract_strided_slice %12 {offsets = [0, 96], sizes = [1, 32], strides = [1, 1]} : vector<1x128xf32> to vector<1x32xf32>
    %21 = math.tanh %19 : vector<1x32xf32>
    %22 = arith.mulf %20, %21 : vector<1x32xf32>
    %c0_5 = arith.constant 0 : index
    %c0_6 = arith.constant 0 : index
    %23 = vector.load %arg5[%c0_5, %c0_6] : memref<16x32xf32, #tpu.memory_space<vmem>>, vector<1x32xf32>
    tpu.vector_store %arg5[%c0_5, %c0_6], %22 {strides = array<i32>} : memref<16x32xf32, #tpu.memory_space<vmem>>, vector<1x32xf32>,
    %c1 = arith.constant 1 : index
    %24 = memref.load %arg1[%c1] : memref<16xi32, #tpu.memory_space<smem>>
    %25 = arith.index_cast %24 : i32 to index
    %c0_7 = arith.constant 0 : index
    %26 = vector.load %arg2[%25, %c0_7] : memref<88x128xf32, #tpu.memory_space<vmem>>, vector<1x128xf32>
    %cst_8 = arith.constant dense<0.000000e+00> : vector<1x128xf32>
    %27 = tpu.matmul %22, %0, %cst_8 {dimension_numbers = #tpu.dot_dimension_numbers<[1], [0], [0], [1], [0, 0, 1, 1], [], []>} : vector<1x32xf32>, vector<32x128xf32>, vector<1x128xf32> -> vector<1x128xf32>
    %28 = arith.addf %26, %27 : vector<1x128xf32>
    %29 = arith.negf %28 : vector<1x128xf32>
    %30 = math.exp %29 : vector<1x128xf32>
    %cst_9 = arith.constant 1.000000e+00 : f32
    %31 = vector.broadcast %cst_9 : f32 to vector<1x128xf32>
    %32 = arith.addf %31, %30 : vector<1x128xf32>
    %33 = arith.divf %31, %32 : vector<1x128xf32>
    %34 = math.tanh %28 : vector<1x128xf32>
    %35 = vector.extract_strided_slice %33 {offsets = [0, 32], sizes = [1, 32], strides = [1, 1]} : vector<1x128xf32> to vector<1x32xf32>
    %36 = arith.mulf %35, %19 : vector<1x32xf32>
    %37 = vector.extract_strided_slice %33 {offsets = [0, 0], sizes = [1, 32], strides = [1, 1]} : vector<1x128xf32> to vector<1x32xf32>
    %38 = vector.extract_strided_slice %34 {offsets = [0, 64], sizes = [1, 32], strides = [1, 1]} : vector<1x128xf32> to vector<1x32xf32>
    %39 = arith.mulf %37, %38 : vector<1x32xf32>
    %40 = arith.addf %36, %39 : vector<1x32xf32>
    %41 = vector.extract_strided_slice %33 {offsets = [0, 96], sizes = [1, 32], strides = [1, 1]} : vector<1x128xf32> to vector<1x32xf32>
    %42 = math.tanh %40 : vector<1x32xf32>
    %43 = arith.mulf %41, %42 : vector<1x32xf32>
    %c1_10 = arith.constant 1 : index
    %c0_11 = arith.constant 0 : index
    %44 = vector.load %arg5[%c1_10, %c0_11] : memref<16x32xf32, #tpu.memory_space<vmem>>, vector<1x32xf32>
    tpu.vector_store %arg5[%c1_10, %c0_11], %43 {strides = array<i32>} : memref<16x32xf32, #tpu.memory_space<vmem>>, vector<1x32xf32>,
    %c2 = arith.constant 2 : index
    %45 = memref.load %arg1[%c2] : memref<16xi32, #tpu.memory_space<smem>>
    %46 = arith.index_cast %45 : i32 to index
    %c0_12 = arith.constant 0 : index
    %47 = vector.load %arg2[%46, %c0_12] : memref<88x128xf32, #tpu.memory_space<vmem>>, vector<1x128xf32>
    %cst_13 = arith.constant dense<0.000000e+00> : vector<1x128xf32>
    %48 = tpu.matmul %43, %0, %cst_13 {dimension_numbers = #tpu.dot_dimension_numbers<[1], [0], [0], [1], [0, 0, 1, 1], [], []>} : vector<1x32xf32>, vector<32x128xf32>, vector<1x128xf32> -> vector<1x128xf32>
    %49 = arith.addf %47, %48 : vector<1x128xf32>
    %50 = arith.negf %49 : vector<1x128xf32>
    %51 = math.exp %50 : vector<1x128xf32>
    %cst_14 = arith.constant 1.000000e+00 : f32
    %52 = vector.broadcast %cst_14 : f32 to vector<1x128xf32>
    %53 = arith.addf %52, %51 : vector<1x128xf32>
    %54 = arith.divf %52, %53 : vector<1x128xf32>
    %55 = math.tanh %49 : vector<1x128xf32>
    %56 = vector.extract_strided_slice %54 {offsets = [0, 32], sizes = [1, 32], strides = [1, 1]} : vector<1x128xf32> to vector<1x32xf32>
    %57 = arith.mulf %56, %40 : vector<1x32xf32>
    %58 = vector.extract_strided_slice %54 {offsets = [0, 0], sizes = [1, 32], strides = [1, 1]} : vector<1x128xf32> to vector<1x32xf32>
    %59 = vector.extract_strided_slice %55 {offsets = [0, 64], sizes = [1, 32], strides = [1, 1]} : vector<1x128xf32> to vector<1x32xf32>
    %60 = arith.mulf %58, %59 : vector<1x32xf32>
    %61 = arith.addf %57, %60 : vector<1x32xf32>
    %62 = vector.extract_strided_slice %54 {offsets = [0, 96], sizes = [1, 32], strides = [1, 1]} : vector<1x128xf32> to vector<1x32xf32>
    %63 = math.tanh %61 : vector<1x32xf32>
    %64 = arith.mulf %62, %63 : vector<1x32xf32>
    %c2_15 = arith.constant 2 : index
    %c0_16 = arith.constant 0 : index
    %65 = vector.load %arg5[%c2_15, %c0_16] : memref<16x32xf32, #tpu.memory_space<vmem>>, vector<1x32xf32>
    tpu.vector_store %arg5[%c2_15, %c0_16], %64 {strides = array<i32>} : memref<16x32xf32, #tpu.memory_space<vmem>>, vector<1x32xf32>,
    %c3 = arith.constant 3 : index
    %66 = memref.load %arg1[%c3] : memref<16xi32, #tpu.memory_space<smem>>
    %67 = arith.index_cast %66 : i32 to index
    %c0_17 = arith.constant 0 : index
    %68 = vector.load %arg2[%67, %c0_17] : memref<88x128xf32, #tpu.memory_space<vmem>>, vector<1x128xf32>
    %cst_18 = arith.constant dense<0.000000e+00> : vector<1x128xf32>
    %69 = tpu.matmul %64, %0, %cst_18 {dimension_numbers = #tpu.dot_dimension_numbers<[1], [0], [0], [1], [0, 0, 1, 1], [], []>} : vector<1x32xf32>, vector<32x128xf32>, vector<1x128xf32> -> vector<1x128xf32>
    %70 = arith.addf %68, %69 : vector<1x128xf32>
    %71 = arith.negf %70 : vector<1x128xf32>
    %72 = math.exp %71 : vector<1x128xf32>
    %cst_19 = arith.constant 1.000000e+00 : f32
    %73 = vector.broadcast %cst_19 : f32 to vector<1x128xf32>
    %74 = arith.addf %73, %72 : vector<1x128xf32>
    %75 = arith.divf %73, %74 : vector<1x128xf32>
    %76 = math.tanh %70 : vector<1x128xf32>
    %77 = vector.extract_strided_slice %75 {offsets = [0, 32], sizes = [1, 32], strides = [1, 1]} : vector<1x128xf32> to vector<1x32xf32>
    %78 = arith.mulf %77, %61 : vector<1x32xf32>
    %79 = vector.extract_strided_slice %75 {offsets = [0, 0], sizes = [1, 32], strides = [1, 1]} : vector<1x128xf32> to vector<1x32xf32>
    %80 = vector.extract_strided_slice %76 {offsets = [0, 64], sizes = [1, 32], strides = [1, 1]} : vector<1x128xf32> to vector<1x32xf32>
    %81 = arith.mulf %79, %80 : vector<1x32xf32>
    %82 = arith.addf %78, %81 : vector<1x32xf32>
    %83 = vector.extract_strided_slice %75 {offsets = [0, 96], sizes = [1, 32], strides = [1, 1]} : vector<1x128xf32> to vector<1x32xf32>
    %84 = math.tanh %82 : vector<1x32xf32>
    %85 = arith.mulf %83, %84 : vector<1x32xf32>
    %c3_20 = arith.constant 3 : index
    %c0_21 = arith.constant 0 : index
    %86 = vector.load %arg5[%c3_20, %c0_21] : memref<16x32xf32, #tpu.memory_space<vmem>>, vector<1x32xf32>
    tpu.vector_store %arg5[%c3_20, %c0_21], %85 {strides = array<i32>} : memref<16x32xf32, #tpu.memory_space<vmem>>, vector<1x32xf32>,
    %c4 = arith.constant 4 : index
    %87 = memref.load %arg1[%c4] : memref<16xi32, #tpu.memory_space<smem>>
    %88 = arith.index_cast %87 : i32 to index
    %c0_22 = arith.constant 0 : index
    %89 = vector.load %arg2[%88, %c0_22] : memref<88x128xf32, #tpu.memory_space<vmem>>, vector<1x128xf32>
    %cst_23 = arith.constant dense<0.000000e+00> : vector<1x128xf32>
    %90 = tpu.matmul %85, %0, %cst_23 {dimension_numbers = #tpu.dot_dimension_numbers<[1], [0], [0], [1], [0, 0, 1, 1], [], []>} : vector<1x32xf32>, vector<32x128xf32>, vector<1x128xf32> -> vector<1x128xf32>
    %91 = arith.addf %89, %90 : vector<1x128xf32>
    %92 = arith.negf %91 : vector<1x128xf32>
    %93 = math.exp %92 : vector<1x128xf32>
    %cst_24 = arith.constant 1.000000e+00 : f32
    %94 = vector.broadcast %cst_24 : f32 to vector<1x128xf32>
    %95 = arith.addf %94, %93 : vector<1x128xf32>
    %96 = arith.divf %94, %95 : vector<1x128xf32>
    %97 = math.tanh %91 : vector<1x128xf32>
    %98 = vector.extract_strided_slice %96 {offsets = [0, 32], sizes = [1, 32], strides = [1, 1]} : vector<1x128xf32> to vector<1x32xf32>
    %99 = arith.mulf %98, %82 : vector<1x32xf32>
    %100 = vector.extract_strided_slice %96 {offsets = [0, 0], sizes = [1, 32], strides = [1, 1]} : vector<1x128xf32> to vector<1x32xf32>
    %101 = vector.extract_strided_slice %97 {offsets = [0, 64], sizes = [1, 32], strides = [1, 1]} : vector<1x128xf32> to vector<1x32xf32>
    %102 = arith.mulf %100, %101 : vector<1x32xf32>
    %103 = arith.addf %99, %102 : vector<1x32xf32>
    %104 = vector.extract_strided_slice %96 {offsets = [0, 96], sizes = [1, 32], strides = [1, 1]} : vector<1x128xf32> to vector<1x32xf32>
    %105 = math.tanh %103 : vector<1x32xf32>
    %106 = arith.mulf %104, %105 : vector<1x32xf32>
    %c4_25 = arith.constant 4 : index
    %c0_26 = arith.constant 0 : index
    %107 = vector.load %arg5[%c4_25, %c0_26] : memref<16x32xf32, #tpu.memory_space<vmem>>, vector<1x32xf32>
    tpu.vector_store %arg5[%c4_25, %c0_26], %106 {strides = array<i32>} : memref<16x32xf32, #tpu.memory_space<vmem>>, vector<1x32xf32>,
    %c5 = arith.constant 5 : index
    %108 = memref.load %arg1[%c5] : memref<16xi32, #tpu.memory_space<smem>>
    %109 = arith.index_cast %108 : i32 to index
    %c0_27 = arith.constant 0 : index
    %110 = vector.load %arg2[%109, %c0_27] : memref<88x128xf32, #tpu.memory_space<vmem>>, vector<1x128xf32>
    %cst_28 = arith.constant dense<0.000000e+00> : vector<1x128xf32>
    %111 = tpu.matmul %106, %0, %cst_28 {dimension_numbers = #tpu.dot_dimension_numbers<[1], [0], [0], [1], [0, 0, 1, 1], [], []>} : vector<1x32xf32>, vector<32x128xf32>, vector<1x128xf32> -> vector<1x128xf32>
    %112 = arith.addf %110, %111 : vector<1x128xf32>
    %113 = arith.negf %112 : vector<1x128xf32>
    %114 = math.exp %113 : vector<1x128xf32>
    %cst_29 = arith.constant 1.000000e+00 : f32
    %115 = vector.broadcast %cst_29 : f32 to vector<1x128xf32>
    %116 = arith.addf %115, %114 : vector<1x128xf32>
    %117 = arith.divf %115, %116 : vector<1x128xf32>
    %118 = math.tanh %112 : vector<1x128xf32>
    %119 = vector.extract_strided_slice %117 {offsets = [0, 32], sizes = [1, 32], strides = [1, 1]} : vector<1x128xf32> to vector<1x32xf32>
    %120 = arith.mulf %119, %103 : vector<1x32xf32>
    %121 = vector.extract_strided_slice %117 {offsets = [0, 0], sizes = [1, 32], strides = [1, 1]} : vector<1x128xf32> to vector<1x32xf32>
    %122 = vector.extract_strided_slice %118 {offsets = [0, 64], sizes = [1, 32], strides = [1, 1]} : vector<1x128xf32> to vector<1x32xf32>
    %123 = arith.mulf %121, %122 : vector<1x32xf32>
    %124 = arith.addf %120, %123 : vector<1x32xf32>
    %125 = vector.extract_strided_slice %117 {offsets = [0, 96], sizes = [1, 32], strides = [1, 1]} : vector<1x128xf32> to vector<1x32xf32>
    %126 = math.tanh %124 : vector<1x32xf32>
    %127 = arith.mulf %125, %126 : vector<1x32xf32>
    %c5_30 = arith.constant 5 : index
    %c0_31 = arith.constant 0 : index
    %128 = vector.load %arg5[%c5_30, %c0_31] : memref<16x32xf32, #tpu.memory_space<vmem>>, vector<1x32xf32>
    tpu.vector_store %arg5[%c5_30, %c0_31], %127 {strides = array<i32>} : memref<16x32xf32, #tpu.memory_space<vmem>>, vector<1x32xf32>,
    %c6 = arith.constant 6 : index
    %129 = memref.load %arg1[%c6] : memref<16xi32, #tpu.memory_space<smem>>
    %130 = arith.index_cast %129 : i32 to index
    %c0_32 = arith.constant 0 : index
    %131 = vector.load %arg2[%130, %c0_32] : memref<88x128xf32, #tpu.memory_space<vmem>>, vector<1x128xf32>
    %cst_33 = arith.constant dense<0.000000e+00> : vector<1x128xf32>
    %132 = tpu.matmul %127, %0, %cst_33 {dimension_numbers = #tpu.dot_dimension_numbers<[1], [0], [0], [1], [0, 0, 1, 1], [], []>} : vector<1x32xf32>, vector<32x128xf32>, vector<1x128xf32> -> vector<1x128xf32>
    %133 = arith.addf %131, %132 : vector<1x128xf32>
    %134 = arith.negf %133 : vector<1x128xf32>
    %135 = math.exp %134 : vector<1x128xf32>
    %cst_34 = arith.constant 1.000000e+00 : f32
    %136 = vector.broadcast %cst_34 : f32 to vector<1x128xf32>
    %137 = arith.addf %136, %135 : vector<1x128xf32>
    %138 = arith.divf %136, %137 : vector<1x128xf32>
    %139 = math.tanh %133 : vector<1x128xf32>
    %140 = vector.extract_strided_slice %138 {offsets = [0, 32], sizes = [1, 32], strides = [1, 1]} : vector<1x128xf32> to vector<1x32xf32>
    %141 = arith.mulf %140, %124 : vector<1x32xf32>
    %142 = vector.extract_strided_slice %138 {offsets = [0, 0], sizes = [1, 32], strides = [1, 1]} : vector<1x128xf32> to vector<1x32xf32>
    %143 = vector.extract_strided_slice %139 {offsets = [0, 64], sizes = [1, 32], strides = [1, 1]} : vector<1x128xf32> to vector<1x32xf32>
    %144 = arith.mulf %142, %143 : vector<1x32xf32>
    %145 = arith.addf %141, %144 : vector<1x32xf32>
    %146 = vector.extract_strided_slice %138 {offsets = [0, 96], sizes = [1, 32], strides = [1, 1]} : vector<1x128xf32> to vector<1x32xf32>
    %147 = math.tanh %145 : vector<1x32xf32>
    %148 = arith.mulf %146, %147 : vector<1x32xf32>
    %c6_35 = arith.constant 6 : index
    %c0_36 = arith.constant 0 : index
    %149 = vector.load %arg5[%c6_35, %c0_36] : memref<16x32xf32, #tpu.memory_space<vmem>>, vector<1x32xf32>
    tpu.vector_store %arg5[%c6_35, %c0_36], %148 {strides = array<i32>} : memref<16x32xf32, #tpu.memory_space<vmem>>, vector<1x32xf32>,
    %c7 = arith.constant 7 : index
    %150 = memref.load %arg1[%c7] : memref<16xi32, #tpu.memory_space<smem>>
    %151 = arith.index_cast %150 : i32 to index
    %c0_37 = arith.constant 0 : index
    %152 = vector.load %arg2[%151, %c0_37] : memref<88x128xf32, #tpu.memory_space<vmem>>, vector<1x128xf32>
    %cst_38 = arith.constant dense<0.000000e+00> : vector<1x128xf32>
    %153 = tpu.matmul %148, %0, %cst_38 {dimension_numbers = #tpu.dot_dimension_numbers<[1], [0], [0], [1], [0, 0, 1, 1], [], []>} : vector<1x32xf32>, vector<32x128xf32>, vector<1x128xf32> -> vector<1x128xf32>
    %154 = arith.addf %152, %153 : vector<1x128xf32>
    %155 = arith.negf %154 : vector<1x128xf32>
    %156 = math.exp %155 : vector<1x128xf32>
    %cst_39 = arith.constant 1.000000e+00 : f32
    %157 = vector.broadcast %cst_39 : f32 to vector<1x128xf32>
    %158 = arith.addf %157, %156 : vector<1x128xf32>
    %159 = arith.divf %157, %158 : vector<1x128xf32>
    %160 = math.tanh %154 : vector<1x128xf32>
    %161 = vector.extract_strided_slice %159 {offsets = [0, 32], sizes = [1, 32], strides = [1, 1]} : vector<1x128xf32> to vector<1x32xf32>
    %162 = arith.mulf %161, %145 : vector<1x32xf32>
    %163 = vector.extract_strided_slice %159 {offsets = [0, 0], sizes = [1, 32], strides = [1, 1]} : vector<1x128xf32> to vector<1x32xf32>
    %164 = vector.extract_strided_slice %160 {offsets = [0, 64], sizes = [1, 32], strides = [1, 1]} : vector<1x128xf32> to vector<1x32xf32>
    %165 = arith.mulf %163, %164 : vector<1x32xf32>
    %166 = arith.addf %162, %165 : vector<1x32xf32>
    %167 = vector.extract_strided_slice %159 {offsets = [0, 96], sizes = [1, 32], strides = [1, 1]} : vector<1x128xf32> to vector<1x32xf32>
    %168 = math.tanh %166 : vector<1x32xf32>
    %169 = arith.mulf %167, %168 : vector<1x32xf32>
    %c7_40 = arith.constant 7 : index
    %c0_41 = arith.constant 0 : index
    %170 = vector.load %arg5[%c7_40, %c0_41] : memref<16x32xf32, #tpu.memory_space<vmem>>, vector<1x32xf32>
    tpu.vector_store %arg5[%c7_40, %c0_41], %169 {strides = array<i32>} : memref<16x32xf32, #tpu.memory_space<vmem>>, vector<1x32xf32>,
    %c8 = arith.constant 8 : index
    %171 = memref.load %arg1[%c8] : memref<16xi32, #tpu.memory_space<smem>>
    %172 = arith.index_cast %171 : i32 to index
    %c0_42 = arith.constant 0 : index
    %173 = vector.load %arg2[%172, %c0_42] : memref<88x128xf32, #tpu.memory_space<vmem>>, vector<1x128xf32>
    %cst_43 = arith.constant dense<0.000000e+00> : vector<1x128xf32>
    %174 = tpu.matmul %169, %0, %cst_43 {dimension_numbers = #tpu.dot_dimension_numbers<[1], [0], [0], [1], [0, 0, 1, 1], [], []>} : vector<1x32xf32>, vector<32x128xf32>, vector<1x128xf32> -> vector<1x128xf32>
    %175 = arith.addf %173, %174 : vector<1x128xf32>
    %176 = arith.negf %175 : vector<1x128xf32>
    %177 = math.exp %176 : vector<1x128xf32>
    %cst_44 = arith.constant 1.000000e+00 : f32
    %178 = vector.broadcast %cst_44 : f32 to vector<1x128xf32>
    %179 = arith.addf %178, %177 : vector<1x128xf32>
    %180 = arith.divf %178, %179 : vector<1x128xf32>
    %181 = math.tanh %175 : vector<1x128xf32>
    %182 = vector.extract_strided_slice %180 {offsets = [0, 32], sizes = [1, 32], strides = [1, 1]} : vector<1x128xf32> to vector<1x32xf32>
    %183 = arith.mulf %182, %166 : vector<1x32xf32>
    %184 = vector.extract_strided_slice %180 {offsets = [0, 0], sizes = [1, 32], strides = [1, 1]} : vector<1x128xf32> to vector<1x32xf32>
    %185 = vector.extract_strided_slice %181 {offsets = [0, 64], sizes = [1, 32], strides = [1, 1]} : vector<1x128xf32> to vector<1x32xf32>
    %186 = arith.mulf %184, %185 : vector<1x32xf32>
    %187 = arith.addf %183, %186 : vector<1x32xf32>
    %188 = vector.extract_strided_slice %180 {offsets = [0, 96], sizes = [1, 32], strides = [1, 1]} : vector<1x128xf32> to vector<1x32xf32>
    %189 = math.tanh %187 : vector<1x32xf32>
    %190 = arith.mulf %188, %189 : vector<1x32xf32>
    %c8_45 = arith.constant 8 : index
    %c0_46 = arith.constant 0 : index
    %191 = vector.load %arg5[%c8_45, %c0_46] : memref<16x32xf32, #tpu.memory_space<vmem>>, vector<1x32xf32>
    tpu.vector_store %arg5[%c8_45, %c0_46], %190 {strides = array<i32>} : memref<16x32xf32, #tpu.memory_space<vmem>>, vector<1x32xf32>,
    %c9 = arith.constant 9 : index
    %192 = memref.load %arg1[%c9] : memref<16xi32, #tpu.memory_space<smem>>
    %193 = arith.index_cast %192 : i32 to index
    %c0_47 = arith.constant 0 : index
    %194 = vector.load %arg2[%193, %c0_47] : memref<88x128xf32, #tpu.memory_space<vmem>>, vector<1x128xf32>
    %cst_48 = arith.constant dense<0.000000e+00> : vector<1x128xf32>
    %195 = tpu.matmul %190, %0, %cst_48 {dimension_numbers = #tpu.dot_dimension_numbers<[1], [0], [0], [1], [0, 0, 1, 1], [], []>} : vector<1x32xf32>, vector<32x128xf32>, vector<1x128xf32> -> vector<1x128xf32>
    %196 = arith.addf %194, %195 : vector<1x128xf32>
    %197 = arith.negf %196 : vector<1x128xf32>
    %198 = math.exp %197 : vector<1x128xf32>
    %cst_49 = arith.constant 1.000000e+00 : f32
    %199 = vector.broadcast %cst_49 : f32 to vector<1x128xf32>
    %200 = arith.addf %199, %198 : vector<1x128xf32>
    %201 = arith.divf %199, %200 : vector<1x128xf32>
    %202 = math.tanh %196 : vector<1x128xf32>
    %203 = vector.extract_strided_slice %201 {offsets = [0, 32], sizes = [1, 32], strides = [1, 1]} : vector<1x128xf32> to vector<1x32xf32>
    %204 = arith.mulf %203, %187 : vector<1x32xf32>
    %205 = vector.extract_strided_slice %201 {offsets = [0, 0], sizes = [1, 32], strides = [1, 1]} : vector<1x128xf32> to vector<1x32xf32>
    %206 = vector.extract_strided_slice %202 {offsets = [0, 64], sizes = [1, 32], strides = [1, 1]} : vector<1x128xf32> to vector<1x32xf32>
    %207 = arith.mulf %205, %206 : vector<1x32xf32>
    %208 = arith.addf %204, %207 : vector<1x32xf32>
    %209 = vector.extract_strided_slice %201 {offsets = [0, 96], sizes = [1, 32], strides = [1, 1]} : vector<1x128xf32> to vector<1x32xf32>
    %210 = math.tanh %208 : vector<1x32xf32>
    %211 = arith.mulf %209, %210 : vector<1x32xf32>
    %c9_50 = arith.constant 9 : index
    %c0_51 = arith.constant 0 : index
    %212 = vector.load %arg5[%c9_50, %c0_51] : memref<16x32xf32, #tpu.memory_space<vmem>>, vector<1x32xf32>
    tpu.vector_store %arg5[%c9_50, %c0_51], %211 {strides = array<i32>} : memref<16x32xf32, #tpu.memory_space<vmem>>, vector<1x32xf32>,
    %c10 = arith.constant 10 : index
    %213 = memref.load %arg1[%c10] : memref<16xi32, #tpu.memory_space<smem>>
    %214 = arith.index_cast %213 : i32 to index
    %c0_52 = arith.constant 0 : index
    %215 = vector.load %arg2[%214, %c0_52] : memref<88x128xf32, #tpu.memory_space<vmem>>, vector<1x128xf32>
    %cst_53 = arith.constant dense<0.000000e+00> : vector<1x128xf32>
    %216 = tpu.matmul %211, %0, %cst_53 {dimension_numbers = #tpu.dot_dimension_numbers<[1], [0], [0], [1], [0, 0, 1, 1], [], []>} : vector<1x32xf32>, vector<32x128xf32>, vector<1x128xf32> -> vector<1x128xf32>
    %217 = arith.addf %215, %216 : vector<1x128xf32>
    %218 = arith.negf %217 : vector<1x128xf32>
    %219 = math.exp %218 : vector<1x128xf32>
    %cst_54 = arith.constant 1.000000e+00 : f32
    %220 = vector.broadcast %cst_54 : f32 to vector<1x128xf32>
    %221 = arith.addf %220, %219 : vector<1x128xf32>
    %222 = arith.divf %220, %221 : vector<1x128xf32>
    %223 = math.tanh %217 : vector<1x128xf32>
    %224 = vector.extract_strided_slice %222 {offsets = [0, 32], sizes = [1, 32], strides = [1, 1]} : vector<1x128xf32> to vector<1x32xf32>
    %225 = arith.mulf %224, %208 : vector<1x32xf32>
    %226 = vector.extract_strided_slice %222 {offsets = [0, 0], sizes = [1, 32], strides = [1, 1]} : vector<1x128xf32> to vector<1x32xf32>
    %227 = vector.extract_strided_slice %223 {offsets = [0, 64], sizes = [1, 32], strides = [1, 1]} : vector<1x128xf32> to vector<1x32xf32>
    %228 = arith.mulf %226, %227 : vector<1x32xf32>
    %229 = arith.addf %225, %228 : vector<1x32xf32>
    %230 = vector.extract_strided_slice %222 {offsets = [0, 96], sizes = [1, 32], strides = [1, 1]} : vector<1x128xf32> to vector<1x32xf32>
    %231 = math.tanh %229 : vector<1x32xf32>
    %232 = arith.mulf %230, %231 : vector<1x32xf32>
    %c10_55 = arith.constant 10 : index
    %c0_56 = arith.constant 0 : index
    %233 = vector.load %arg5[%c10_55, %c0_56] : memref<16x32xf32, #tpu.memory_space<vmem>>, vector<1x32xf32>
    tpu.vector_store %arg5[%c10_55, %c0_56], %232 {strides = array<i32>} : memref<16x32xf32, #tpu.memory_space<vmem>>, vector<1x32xf32>,
    %c11 = arith.constant 11 : index
    %234 = memref.load %arg1[%c11] : memref<16xi32, #tpu.memory_space<smem>>
    %235 = arith.index_cast %234 : i32 to index
    %c0_57 = arith.constant 0 : index
    %236 = vector.load %arg2[%235, %c0_57] : memref<88x128xf32, #tpu.memory_space<vmem>>, vector<1x128xf32>
    %cst_58 = arith.constant dense<0.000000e+00> : vector<1x128xf32>
    %237 = tpu.matmul %232, %0, %cst_58 {dimension_numbers = #tpu.dot_dimension_numbers<[1], [0], [0], [1], [0, 0, 1, 1], [], []>} : vector<1x32xf32>, vector<32x128xf32>, vector<1x128xf32> -> vector<1x128xf32>
    %238 = arith.addf %236, %237 : vector<1x128xf32>
    %239 = arith.negf %238 : vector<1x128xf32>
    %240 = math.exp %239 : vector<1x128xf32>
    %cst_59 = arith.constant 1.000000e+00 : f32
    %241 = vector.broadcast %cst_59 : f32 to vector<1x128xf32>
    %242 = arith.addf %241, %240 : vector<1x128xf32>
    %243 = arith.divf %241, %242 : vector<1x128xf32>
    %244 = math.tanh %238 : vector<1x128xf32>
    %245 = vector.extract_strided_slice %243 {offsets = [0, 32], sizes = [1, 32], strides = [1, 1]} : vector<1x128xf32> to vector<1x32xf32>
    %246 = arith.mulf %245, %229 : vector<1x32xf32>
    %247 = vector.extract_strided_slice %243 {offsets = [0, 0], sizes = [1, 32], strides = [1, 1]} : vector<1x128xf32> to vector<1x32xf32>
    %248 = vector.extract_strided_slice %244 {offsets = [0, 64], sizes = [1, 32], strides = [1, 1]} : vector<1x128xf32> to vector<1x32xf32>
    %249 = arith.mulf %247, %248 : vector<1x32xf32>
    %250 = arith.addf %246, %249 : vector<1x32xf32>
    %251 = vector.extract_strided_slice %243 {offsets = [0, 96], sizes = [1, 32], strides = [1, 1]} : vector<1x128xf32> to vector<1x32xf32>
    %252 = math.tanh %250 : vector<1x32xf32>
    %253 = arith.mulf %251, %252 : vector<1x32xf32>
    %c11_60 = arith.constant 11 : index
    %c0_61 = arith.constant 0 : index
    %254 = vector.load %arg5[%c11_60, %c0_61] : memref<16x32xf32, #tpu.memory_space<vmem>>, vector<1x32xf32>
    tpu.vector_store %arg5[%c11_60, %c0_61], %253 {strides = array<i32>} : memref<16x32xf32, #tpu.memory_space<vmem>>, vector<1x32xf32>,
    %c12 = arith.constant 12 : index
    %255 = memref.load %arg1[%c12] : memref<16xi32, #tpu.memory_space<smem>>
    %256 = arith.index_cast %255 : i32 to index
    %c0_62 = arith.constant 0 : index
    %257 = vector.load %arg2[%256, %c0_62] : memref<88x128xf32, #tpu.memory_space<vmem>>, vector<1x128xf32>
    %cst_63 = arith.constant dense<0.000000e+00> : vector<1x128xf32>
    %258 = tpu.matmul %253, %0, %cst_63 {dimension_numbers = #tpu.dot_dimension_numbers<[1], [0], [0], [1], [0, 0, 1, 1], [], []>} : vector<1x32xf32>, vector<32x128xf32>, vector<1x128xf32> -> vector<1x128xf32>
    %259 = arith.addf %257, %258 : vector<1x128xf32>
    %260 = arith.negf %259 : vector<1x128xf32>
    %261 = math.exp %260 : vector<1x128xf32>
    %cst_64 = arith.constant 1.000000e+00 : f32
    %262 = vector.broadcast %cst_64 : f32 to vector<1x128xf32>
    %263 = arith.addf %262, %261 : vector<1x128xf32>
    %264 = arith.divf %262, %263 : vector<1x128xf32>
    %265 = math.tanh %259 : vector<1x128xf32>
    %266 = vector.extract_strided_slice %264 {offsets = [0, 32], sizes = [1, 32], strides = [1, 1]} : vector<1x128xf32> to vector<1x32xf32>
    %267 = arith.mulf %266, %250 : vector<1x32xf32>
    %268 = vector.extract_strided_slice %264 {offsets = [0, 0], sizes = [1, 32], strides = [1, 1]} : vector<1x128xf32> to vector<1x32xf32>
    %269 = vector.extract_strided_slice %265 {offsets = [0, 64], sizes = [1, 32], strides = [1, 1]} : vector<1x128xf32> to vector<1x32xf32>
    %270 = arith.mulf %268, %269 : vector<1x32xf32>
    %271 = arith.addf %267, %270 : vector<1x32xf32>
    %272 = vector.extract_strided_slice %264 {offsets = [0, 96], sizes = [1, 32], strides = [1, 1]} : vector<1x128xf32> to vector<1x32xf32>
    %273 = math.tanh %271 : vector<1x32xf32>
    %274 = arith.mulf %272, %273 : vector<1x32xf32>
    %c12_65 = arith.constant 12 : index
    %c0_66 = arith.constant 0 : index
    %275 = vector.load %arg5[%c12_65, %c0_66] : memref<16x32xf32, #tpu.memory_space<vmem>>, vector<1x32xf32>
    tpu.vector_store %arg5[%c12_65, %c0_66], %274 {strides = array<i32>} : memref<16x32xf32, #tpu.memory_space<vmem>>, vector<1x32xf32>,
    %c13 = arith.constant 13 : index
    %276 = memref.load %arg1[%c13] : memref<16xi32, #tpu.memory_space<smem>>
    %277 = arith.index_cast %276 : i32 to index
    %c0_67 = arith.constant 0 : index
    %278 = vector.load %arg2[%277, %c0_67] : memref<88x128xf32, #tpu.memory_space<vmem>>, vector<1x128xf32>
    %cst_68 = arith.constant dense<0.000000e+00> : vector<1x128xf32>
    %279 = tpu.matmul %274, %0, %cst_68 {dimension_numbers = #tpu.dot_dimension_numbers<[1], [0], [0], [1], [0, 0, 1, 1], [], []>} : vector<1x32xf32>, vector<32x128xf32>, vector<1x128xf32> -> vector<1x128xf32>
    %280 = arith.addf %278, %279 : vector<1x128xf32>
    %281 = arith.negf %280 : vector<1x128xf32>
    %282 = math.exp %281 : vector<1x128xf32>
    %cst_69 = arith.constant 1.000000e+00 : f32
    %283 = vector.broadcast %cst_69 : f32 to vector<1x128xf32>
    %284 = arith.addf %283, %282 : vector<1x128xf32>
    %285 = arith.divf %283, %284 : vector<1x128xf32>
    %286 = math.tanh %280 : vector<1x128xf32>
    %287 = vector.extract_strided_slice %285 {offsets = [0, 32], sizes = [1, 32], strides = [1, 1]} : vector<1x128xf32> to vector<1x32xf32>
    %288 = arith.mulf %287, %271 : vector<1x32xf32>
    %289 = vector.extract_strided_slice %285 {offsets = [0, 0], sizes = [1, 32], strides = [1, 1]} : vector<1x128xf32> to vector<1x32xf32>
    %290 = vector.extract_strided_slice %286 {offsets = [0, 64], sizes = [1, 32], strides = [1, 1]} : vector<1x128xf32> to vector<1x32xf32>
    %291 = arith.mulf %289, %290 : vector<1x32xf32>
    %292 = arith.addf %288, %291 : vector<1x32xf32>
    %293 = vector.extract_strided_slice %285 {offsets = [0, 96], sizes = [1, 32], strides = [1, 1]} : vector<1x128xf32> to vector<1x32xf32>
    %294 = math.tanh %292 : vector<1x32xf32>
    %295 = arith.mulf %293, %294 : vector<1x32xf32>
    %c13_70 = arith.constant 13 : index
    %c0_71 = arith.constant 0 : index
    %296 = vector.load %arg5[%c13_70, %c0_71] : memref<16x32xf32, #tpu.memory_space<vmem>>, vector<1x32xf32>
    tpu.vector_store %arg5[%c13_70, %c0_71], %295 {strides = array<i32>} : memref<16x32xf32, #tpu.memory_space<vmem>>, vector<1x32xf32>,
    %c14 = arith.constant 14 : index
    %297 = memref.load %arg1[%c14] : memref<16xi32, #tpu.memory_space<smem>>
    %298 = arith.index_cast %297 : i32 to index
    %c0_72 = arith.constant 0 : index
    %299 = vector.load %arg2[%298, %c0_72] : memref<88x128xf32, #tpu.memory_space<vmem>>, vector<1x128xf32>
    %cst_73 = arith.constant dense<0.000000e+00> : vector<1x128xf32>
    %300 = tpu.matmul %295, %0, %cst_73 {dimension_numbers = #tpu.dot_dimension_numbers<[1], [0], [0], [1], [0, 0, 1, 1], [], []>} : vector<1x32xf32>, vector<32x128xf32>, vector<1x128xf32> -> vector<1x128xf32>
    %301 = arith.addf %299, %300 : vector<1x128xf32>
    %302 = arith.negf %301 : vector<1x128xf32>
    %303 = math.exp %302 : vector<1x128xf32>
    %cst_74 = arith.constant 1.000000e+00 : f32
    %304 = vector.broadcast %cst_74 : f32 to vector<1x128xf32>
    %305 = arith.addf %304, %303 : vector<1x128xf32>
    %306 = arith.divf %304, %305 : vector<1x128xf32>
    %307 = math.tanh %301 : vector<1x128xf32>
    %308 = vector.extract_strided_slice %306 {offsets = [0, 32], sizes = [1, 32], strides = [1, 1]} : vector<1x128xf32> to vector<1x32xf32>
    %309 = arith.mulf %308, %292 : vector<1x32xf32>
    %310 = vector.extract_strided_slice %306 {offsets = [0, 0], sizes = [1, 32], strides = [1, 1]} : vector<1x128xf32> to vector<1x32xf32>
    %311 = vector.extract_strided_slice %307 {offsets = [0, 64], sizes = [1, 32], strides = [1, 1]} : vector<1x128xf32> to vector<1x32xf32>
    %312 = arith.mulf %310, %311 : vector<1x32xf32>
    %313 = arith.addf %309, %312 : vector<1x32xf32>
    %314 = vector.extract_strided_slice %306 {offsets = [0, 96], sizes = [1, 32], strides = [1, 1]} : vector<1x128xf32> to vector<1x32xf32>
    %315 = math.tanh %313 : vector<1x32xf32>
    %316 = arith.mulf %314, %315 : vector<1x32xf32>
    %c14_75 = arith.constant 14 : index
    %c0_76 = arith.constant 0 : index
    %317 = vector.load %arg5[%c14_75, %c0_76] : memref<16x32xf32, #tpu.memory_space<vmem>>, vector<1x32xf32>
    tpu.vector_store %arg5[%c14_75, %c0_76], %316 {strides = array<i32>} : memref<16x32xf32, #tpu.memory_space<vmem>>, vector<1x32xf32>,
    %c15 = arith.constant 15 : index
    %318 = memref.load %arg1[%c15] : memref<16xi32, #tpu.memory_space<smem>>
    %319 = arith.index_cast %318 : i32 to index
    %c0_77 = arith.constant 0 : index
    %320 = vector.load %arg2[%319, %c0_77] : memref<88x128xf32, #tpu.memory_space<vmem>>, vector<1x128xf32>
    %cst_78 = arith.constant dense<0.000000e+00> : vector<1x128xf32>
    %321 = tpu.matmul %316, %0, %cst_78 {dimension_numbers = #tpu.dot_dimension_numbers<[1], [0], [0], [1], [0, 0, 1, 1], [], []>} : vector<1x32xf32>, vector<32x128xf32>, vector<1x128xf32> -> vector<1x128xf32>
    %322 = arith.addf %320, %321 : vector<1x128xf32>
    %323 = arith.negf %322 : vector<1x128xf32>
    %324 = math.exp %323 : vector<1x128xf32>
    %cst_79 = arith.constant 1.000000e+00 : f32
    %325 = vector.broadcast %cst_79 : f32 to vector<1x128xf32>
    %326 = arith.addf %325, %324 : vector<1x128xf32>
    %327 = arith.divf %325, %326 : vector<1x128xf32>
    %328 = math.tanh %322 : vector<1x128xf32>
    %329 = vector.extract_strided_slice %327 {offsets = [0, 32], sizes = [1, 32], strides = [1, 1]} : vector<1x128xf32> to vector<1x32xf32>
    %330 = arith.mulf %329, %313 : vector<1x32xf32>
    %331 = vector.extract_strided_slice %327 {offsets = [0, 0], sizes = [1, 32], strides = [1, 1]} : vector<1x128xf32> to vector<1x32xf32>
    %332 = vector.extract_strided_slice %328 {offsets = [0, 64], sizes = [1, 32], strides = [1, 1]} : vector<1x128xf32> to vector<1x32xf32>
    %333 = arith.mulf %331, %332 : vector<1x32xf32>
    %334 = arith.addf %330, %333 : vector<1x32xf32>
    %335 = vector.extract_strided_slice %327 {offsets = [0, 96], sizes = [1, 32], strides = [1, 1]} : vector<1x128xf32> to vector<1x32xf32>
    %336 = math.tanh %334 : vector<1x32xf32>
    %337 = arith.mulf %335, %336 : vector<1x32xf32>
    %c15_80 = arith.constant 15 : index
    %c0_81 = arith.constant 0 : index
    %338 = vector.load %arg5[%c15_80, %c0_81] : memref<16x32xf32, #tpu.memory_space<vmem>>, vector<1x32xf32>
    tpu.vector_store %arg5[%c15_80, %c0_81], %337 {strides = array<i32>} : memref<16x32xf32, #tpu.memory_space<vmem>>, vector<1x32xf32>,
    %c0_82 = arith.constant 0 : index
    %c0_83 = arith.constant 0 : index
    %339 = vector.load %arg5[%c0_82, %c0_83] : memref<16x32xf32, #tpu.memory_space<vmem>>, vector<16x32xf32>
    %c0_84 = arith.constant 0 : index
    %c0_85 = arith.constant 0 : index
    %340 = vector.load %arg3[%c0_84, %c0_85] : memref<33x5xf32, #tpu.memory_space<vmem>>, vector<32x5xf32>
    %c32 = arith.constant 32 : index
    %c0_86 = arith.constant 0 : index
    %341 = vector.load %arg3[%c32, %c0_86] : memref<33x5xf32, #tpu.memory_space<vmem>>, vector<1x5xf32>
    %cst_87 = arith.constant dense<0.000000e+00> : vector<16x5xf32>
    %342 = tpu.matmul %339, %340, %cst_87 {dimension_numbers = #tpu.dot_dimension_numbers<[1], [0], [0], [1], [0, 0, 1, 1], [], []>} : vector<16x32xf32>, vector<32x5xf32>, vector<16x5xf32> -> vector<16x5xf32>
    %343 = vector.broadcast %341 : vector<1x5xf32> to vector<16x5xf32>
    %344 = arith.addf %342, %343 : vector<16x5xf32>
    %cst_88 = arith.constant dense<0xFF800000> : vector<16xf32>
    %345 = vector.multi_reduction <maximumf>, %344, %cst_88 [1] : vector<16x5xf32> to vector<16xf32>
    %346 = vector.shape_cast %345 : vector<16xf32> to vector<16x1xf32>
    %347 = vector.broadcast %346 : vector<16x1xf32> to vector<16x5xf32>
    %348 = arith.subf %344, %347 : vector<16x5xf32>
    %349 = math.exp %348 : vector<16x5xf32>
    %cst_89 = arith.constant dense<0.000000e+00> : vector<16xf32>
    %350 = vector.multi_reduction <add>, %349, %cst_89 [1] : vector<16x5xf32> to vector<16xf32>
    %351 = vector.shape_cast %350 : vector<16xf32> to vector<16x1xf32>
    %352 = math.log %351 : vector<16x1xf32>
    %353 = vector.broadcast %352 : vector<16x1xf32> to vector<16x5xf32>
    %354 = arith.subf %348, %353 : vector<16x5xf32>
    %c0_90 = arith.constant 0 : index
    %c0_91 = arith.constant 0 : index
    %355 = vector.load %arg4[%c0_90, %c0_91] : memref<16x5xf32, #tpu.memory_space<vmem>>, vector<16x5xf32>
    tpu.vector_store %arg4[%c0_90, %c0_91], %354 {strides = array<i32>} : memref<16x5xf32, #tpu.memory_space<vmem>>, vector<16x5xf32>,
    return
  }
  func.func @transform_0(%arg0: i32, %arg1: memref<16xi32, #tpu.memory_space<smem>>) -> (i32, i32) {
    %c0_i32 = arith.constant 0 : i32
    %c0_i32_0 = arith.constant 0 : i32
    %c0_i32_1 = arith.constant 0 : i32
    return %c0_i32, %c0_i32_0 : i32, i32
  }
  func.func @transform_1(%arg0: i32, %arg1: memref<16xi32, #tpu.memory_space<smem>>) -> (i32, i32) {
    %c0_i32 = arith.constant 0 : i32
    %c0_i32_0 = arith.constant 0 : i32
    %c0_i32_1 = arith.constant 0 : i32
    return %c0_i32, %c0_i32_0 : i32, i32
  }
  func.func @transform_2(%arg0: i32, %arg1: memref<16xi32, #tpu.memory_space<smem>>) -> (i32, i32) {
    %c0_i32 = arith.constant 0 : i32
    %c0_i32_0 = arith.constant 0 : i32
    %c0_i32_1 = arith.constant 0 : i32
    return %c0_i32, %c0_i32_0 : i32, i32
  }
}

</mosaic_0001>

<llo_original>
// kernel: net_forward.1
$region0: #{net_forward.1}
  #allocation0 [shape = 'u32[]', space=smem, size = 0x4, offset = 0x4, fixed_abs, tag = 'smem constant byte address 0x4 - core index']
  #allocation1 [shape = 'u32[144,128]{1,0:T(1,128)}', space=vmem, size = 0x12000, scoped, tag = 'internal scratch']
  #allocation2 [shape = 'f32[16,32]{1,0:T(8,128)}', space=vmem, size = 0x2000, scoped, tag = 'scratch operand']
  #allocation3 [shape = 's32[1]{0}', space=sflag, size = 0x4, scoped, tag = 'scoped memory for net_forward.1']
  #allocation4 [shape = 'u8[512]{0}', space=smem, size = 0x200, scoped, tag = 'prefetched SMEM operand 0']
  %s0 = inlined_call_operand.vmem [shape: s32[16], index: 0, kind: input, shape index: {}]
  %s1 = inlined_call_operand.vmem [shape: f32[88,128], index: 1, kind: input, shape index: {}]
  %s2 = inlined_call_operand.vmem [shape: f32[33,5], index: 2, kind: input, shape index: {}]
  %s3 = inlined_call_operand.vmem [shape: f32[16,5], index: 3, kind: output, shape index: {}]
  %s4 = sld [smem:[#allocation0]]
  $region18: #{net_forward.1} parent=0
    _
  %s6 = ssub.s32 1, %s4
  %s7 = scalar_select 0, %s6, %s4
  %s8 = sshll.u32 %s0, 4
  %s9 = int_to_ptr.vmem [resolvable:$true] %s8
  %11 = dma.vmem_to_smem %s9, 16, [#allocation4], [#allocation3]
  %12 = dma.done [#allocation3], 16
  %13 = sfence
  // Predicated region
  $region2: #{net_forward.1} parent=0 // pred_check
    _
  $region3: #{net_forward.1} parent=0 // pred_check_branch
    %15 = sbr.rel (0) target = $region5
  $region4: #{net_forward.1} parent=0 // pred_region
    _
  $region5: #{net_forward.1} parent=0 // pred_fallthru
    _
  // Predicated region
  $region6: #{net_forward.1} parent=0 // pred_check
    _
  $region7: #{net_forward.1} parent=0 // pred_check_branch
    %17 = sbr.rel (0) target = $region9
  $region8: #{net_forward.1} parent=0 // pred_region
    _
  $region9: #{net_forward.1} parent=0 // pred_fallthru
    _
  %v18 = vld [vmem:[%s1 + $0x38] sm:$0xff]
  %v19 = vld [vmem:[%s1 + $0x40] sm:$0xff]
  %v20 = vld [vmem:[%s1 + $0x48] sm:$0xff]
  %v21 = vld [vmem:[%s1 + $0x50] sm:$0xff]
  %s22 = sld [smem:[#allocation4]]
  %s23 = scalar_lea.vmem %s1, %s22
  %v24 = vld [vmem:[%s23] sm:$0x1]
  %vm25 = vcmask 261120
  %v27 = vsel %vm25, 0.0, 0
  %29 = vmatprep.subr.mxu0 0.0
  %30 = vmatpush1.msra.mxu0 %v18
  %31 = vmatprep.subr.mxu0 0.0
  %32 = vmatpush1.msra.mxu0 %v19
  %33 = vmatprep.subr.mxu0 0.0
  %34 = vmatpush1.msra.mxu0 %v20
  %35 = vmatprep.subr.mxu0 0.0
  %36 = vmatpush1.msra.mxu0 %v21
  %37 = vmatprep.subr.mxu0 0.0
  %38 = vmatpush1.msra.mxu0 0.0
  %39 = vmatprep.subr.mxu0 0.0
  %40 = vmatpush1.msra.mxu0 0.0
  %41 = vmatprep.subr.mxu0 0.0
  %42 = vmatpush1.msra.mxu0 0.0
  %43 = vmatprep.subr.mxu0 0.0
  %44 = vmatpush1.msra.mxu0 0.0
  %45 = vmatprep.subr.mxu0 0.0
  %46 = vmatpush1.msra.mxu0 0.0
  %47 = vmatprep.subr.mxu0 0.0
  %48 = vmatpush1.msra.mxu0 0.0
  %49 = vmatprep.subr.mxu0 0.0
  %50 = vmatpush1.msra.mxu0 0.0
  %51 = vmatprep.subr.mxu0 0.0
  %52 = vmatpush1.msra.mxu0 0.0
  %53 = vmatprep.subr.mxu0 0.0
  %54 = vmatpush1.msra.mxu0 0.0
  %55 = vmatprep.subr.mxu0 0.0
  %56 = vmatpush1.msra.mxu0 0.0
  %57 = vmatprep.subr.mxu0 0.0
  %58 = vmatpush1.msra.mxu0 0.0
  %59 = vmatprep.subr.mxu0 0.0
  %60 = vmatpush1.msra.mxu0 0.0
  %61 = vmatprep.subr.mxu0 0.0
  %62 = vmatpush1.msra.mxu0 0.0
  %63 = vmatprep.subr.mxu0 0.0
  %64 = vmatpush1.msra.mxu0 0.0
  %65 = vmatprep.subr.mxu0 0.0
  %66 = vmatpush1.msra.mxu0 0.0
  %67 = vmatprep.subr.mxu0 0.0
  %68 = vmatpush1.msra.mxu0 0.0
  %69 = vmatprep.subr.mxu0 0.0
  %70 = vmatpush1.msra.mxu0 0.0
  %71 = vmatprep.subr.mxu0 0.0
  %72 = vmatpush1.msra.mxu0 0.0
  %73 = vmatprep.subr.mxu0 0.0
  %74 = vmatpush1.msra.mxu0 0.0
  %75 = vmatprep.subr.mxu0 0.0
  %76 = vmatpush1.msra.mxu0 0.0
  %77 = vmatprep.subr.mxu0 0.0
  %78 = vmatpush1.msra.mxu0 0.0
  %79 = vmatprep.subr.mxu0 0.0
  %80 = vmatpush1.msra.mxu0 0.0
  %81 = vmatprep.subr.mxu0 0.0
  %82 = vmatpush1.msra.mxu0 0.0
  %83 = vmatprep.subr.mxu0 0.0
  %84 = vmatpush1.msra.mxu0 0.0
  %85 = vmatprep.subr.mxu0 0.0
  %86 = vmatpush1.msra.mxu0 0.0
  %87 = vmatprep.subr.mxu0 0.0
  %88 = vmatpush1.msra.mxu0 0.0
  %89 = vmatprep.subr.mxu0 0.0
  %90 = vmatpush1.msra.mxu0 0.0
  %91 = vmatprep.subr.mxu0 0.0
  %92 = vmatpush1.msra.mxu0 0.0
  %93 = vmatprep.mubr.f32.mxu0 0.0
  %94 = vmatmul.mubr.f32.gmra.mrb[0].mxu0 %v27
  %v95 = vpop.f32.mrb[0].mxu0
  %v96 = vadd.f32 0.0, %v95
  %v97 = vpop.f32.mrb[0].mxu0
  %98 = vdwg.mxu0
  %v99 = vadd.f32 %v24, %v96
  %v100 = vxor.u32 %v99, 2147483648
  %v101 = vmul.f32 %v100, 1.442695
  %v102 = vpow.pop %v101
  %v103 = vadd.f32 %v102, 1.0
  %v104 = vrcp.pop %v103
  %v105 = vmul.f32 1.0, %v104
  %v106 = vtanh.pop %v99
  %v107 = vmul.f32 %v105, 0.0
  %109 = vrot.lane.b32.xlu0 %v106, 64
  %v110 = vpop.permute.xlu0 %109
  %v112 = vmul.f32 %v105, %v110
  %114 = vrot.lane.b32.xlu0 %v112, 32
  %v115 = vpop.permute.xlu0 %114
  %v117 = vadd.f32 %v107, %v115
  %v118 = vtanh.pop %v117
  %120 = vrot.lane.b32.xlu0 %v118, 64
  %v121 = vpop.permute.xlu0 %120
  %v123 = vmul.f32 %v105, %v121
  %125 = vrot.lane.b32.xlu0 %v123, 32
  %v126 = vpop.permute.xlu0 %125
  %vm128 = vcmask 253952
  %129 = vst.msk [vmem:[#allocation2] sm:$0x1] %vm128, %v126
  %s130 = sld [smem:[#allocation4 + $0x1]]
  %s131 = scalar_lea.vmem %s1, %s130
  %v132 = vld [vmem:[%s131] sm:$0x1]
  %v133 = vsel %vm25, %v126, 0
  %135 = vmatprep.subr.mxu0 0.0
  %136 = vmatpush1.msra.mxu0 %v18
  %137 = vmatprep.subr.mxu0 0.0
  %138 = vmatpush1.msra.mxu0 %v19
  %139 = vmatprep.subr.mxu0 0.0
  %140 = vmatpush1.msra.mxu0 %v20
  %141 = vmatprep.subr.mxu0 0.0
  %142 = vmatpush1.msra.mxu0 %v21
  %143 = vmatprep.subr.mxu0 0.0
  %144 = vmatpush1.msra.mxu0 0.0
  %145 = vmatprep.subr.mxu0 0.0
  %146 = vmatpush1.msra.mxu0 0.0
  %147 = vmatprep.subr.mxu0 0.0
  %148 = vmatpush1.msra.mxu0 0.0
  %149 = vmatprep.subr.mxu0 0.0
  %150 = vmatpush1.msra.mxu0 0.0
  %151 = vmatprep.subr.mxu0 0.0
  %152 = vmatpush1.msra.mxu0 0.0
  %153 = vmatprep.subr.mxu0 0.0
  %154 = vmatpush1.msra.mxu0 0.0
  %155 = vmatprep.subr.mxu0 0.0
  %156 = vmatpush1.msra.mxu0 0.0
  %157 = vmatprep.subr.mxu0 0.0
  %158 = vmatpush1.msra.mxu0 0.0
  %159 = vmatprep.subr.mxu0 0.0
  %160 = vmatpush1.msra.mxu0 0.0
  %161 = vmatprep.subr.mxu0 0.0
  %162 = vmatpush1.msra.mxu0 0.0
  %163 = vmatprep.subr.mxu0 0.0
  %164 = vmatpush1.msra.mxu0 0.0
  %165 = vmatprep.subr.mxu0 0.0
  %166 = vmatpush1.msra.mxu0 0.0
  %167 = vmatprep.subr.mxu0 0.0
  %168 = vmatpush1.msra.mxu0 0.0
  %169 = vmatprep.subr.mxu0 0.0
  %170 = vmatpush1.msra.mxu0 0.0
  %171 = vmatprep.subr.mxu0 0.0
  %172 = vmatpush1.msra.mxu0 0.0
  %173 = vmatprep.subr.mxu0 0.0
  %174 = vmatpush1.msra.mxu0 0.0
  %175 = vmatprep.subr.mxu0 0.0
  %176 = vmatpush1.msra.mxu0 0.0
  %177 = vmatprep.subr.mxu0 0.0
  %178 = vmatpush1.msra.mxu0 0.0
  %179 = vmatprep.subr.mxu0 0.0
  %180 = vmatpush1.msra.mxu0 0.0
  %181 = vmatprep.subr.mxu0 0.0
  %182 = vmatpush1.msra.mxu0 0.0
  %183 = vmatprep.subr.mxu0 0.0
  %184 = vmatpush1.msra.mxu0 0.0
  %185 = vmatprep.subr.mxu0 0.0
  %186 = vmatpush1.msra.mxu0 0.0
  %187 = vmatprep.subr.mxu0 0.0
  %188 = vmatpush1.msra.mxu0 0.0
  %189 = vmatprep.subr.mxu0 0.0
  %190 = vmatpush1.msra.mxu0 0.0
  %191 = vmatprep.subr.mxu0 0.0
  %192 = vmatpush1.msra.mxu0 0.0
  %193 = vmatprep.subr.mxu0 0.0
  %194 = vmatpush1.msra.mxu0 0.0
  %195 = vmatprep.subr.mxu0 0.0
  %196 = vmatpush1.msra.mxu0 0.0
  %197 = vmatprep.subr.mxu0 0.0
  %198 = vmatpush1.msra.mxu0 0.0
  %199 = vmatprep.mubr.f32.mxu0 0.0
  %200 = vmatmul.mubr.f32.gmra.mrb[0].mxu0 %v133
  %v201 = vpop.f32.mrb[0].mxu0
  %v202 = vadd.f32 0.0, %v201
  %v203 = vpop.f32.mrb[0].mxu0
  %204 = vdwg.mxu0
  %v205 = vadd.f32 %v132, %v202
  %v206 = vxor.u32 %v205, 2147483648
  %v207 = vmul.f32 %v206, 1.442695
  %v208 = vpow.pop %v207
  %v209 = vadd.f32 %v208, 1.0
  %v210 = vrcp.pop %v209
  %v211 = vmul.f32 1.0, %v210
  %v212 = vtanh.pop %v205
  %v213 = vmul.f32 %v211, %v117
  %215 = vrot.lane.b32.xlu0 %v212, 64
  %v216 = vpop.permute.xlu0 %215
  %v218 = vmul.f32 %v211, %v216
  %220 = vrot.lane.b32.xlu0 %v218, 32
  %v221 = vpop.permute.xlu0 %220
  %v223 = vadd.f32 %v213, %v221
  %v224 = vtanh.pop %v223
  %226 = vrot.lane.b32.xlu0 %v224, 64
  %v227 = vpop.permute.xlu0 %226
  %v229 = vmul.f32 %v211, %v227
  %231 = vrot.lane.b32.xlu0 %v229, 32
  %v232 = vpop.permute.xlu0 %231
  %234 = vst.msk [vmem:[#allocation2 + $0x1] sm:$0x1] %vm128, %v232
  %s235 = sld [smem:[#allocation4 + $0x2]]
  %s236 = scalar_lea.vmem %s1, %s235
  %v237 = vld [vmem:[%s236] sm:$0x1]
  %v238 = vsel %vm25, %v232, 0
  %240 = vmatprep.subr.mxu0 0.0
  %241 = vmatpush1.msra.mxu0 %v18
  %242 = vmatprep.subr.mxu0 0.0
  %243 = vmatpush1.msra.mxu0 %v19
  %244 = vmatprep.subr.mxu0 0.0
  %245 = vmatpush1.msra.mxu0 %v20
  %246 = vmatprep.subr.mxu0 0.0
  %247 = vmatpush1.msra.mxu0 %v21
  %248 = vmatprep.subr.mxu0 0.0
  %249 = vmatpush1.msra.mxu0 0.0
  %250 = vmatprep.subr.mxu0 0.0
  %251 = vmatpush1.msra.mxu0 0.0
  %252 = vmatprep.subr.mxu0 0.0
  %253 = vmatpush1.msra.mxu0 0.0
  %254 = vmatprep.subr.mxu0 0.0
  %255 = vmatpush1.msra.mxu0 0.0
  %256 = vmatprep.subr.mxu0 0.0
  %257 = vmatpush1.msra.mxu0 0.0
  %258 = vmatprep.subr.mxu0 0.0
  %259 = vmatpush1.msra.mxu0 0.0
  %260 = vmatprep.subr.mxu0 0.0
  %261 = vmatpush1.msra.mxu0 0.0
  %262 = vmatprep.subr.mxu0 0.0
  %263 = vmatpush1.msra.mxu0 0.0
  %264 = vmatprep.subr.mxu0 0.0
  %265 = vmatpush1.msra.mxu0 0.0
  %266 = vmatprep.subr.mxu0 0.0
  %267 = vmatpush1.msra.mxu0 0.0
  %268 = vmatprep.subr.mxu0 0.0
  %269 = vmatpush1.msra.mxu0 0.0
  %270 = vmatprep.subr.mxu0 0.0
  %271 = vmatpush1.msra.mxu0 0.0
  %272 = vmatprep.subr.mxu0 0.0
  %273 = vmatpush1.msra.mxu0 0.0
  %274 = vmatprep.subr.mxu0 0.0
  %275 = vmatpush1.msra.mxu0 0.0
  %276 = vmatprep.subr.mxu0 0.0
  %277 = vmatpush1.msra.mxu0 0.0
  %278 = vmatprep.subr.mxu0 0.0
  %279 = vmatpush1.msra.mxu0 0.0
  %280 = vmatprep.subr.mxu0 0.0
  %281 = vmatpush1.msra.mxu0 0.0
  %282 = vmatprep.subr.mxu0 0.0
  %283 = vmatpush1.msra.mxu0 0.0
  %284 = vmatprep.subr.mxu0 0.0
  %285 = vmatpush1.msra.mxu0 0.0
  %286 = vmatprep.subr.mxu0 0.0
  %287 = vmatpush1.msra.mxu0 0.0
  %288 = vmatprep.subr.mxu0 0.0
  %289 = vmatpush1.msra.mxu0 0.0
  %290 = vmatprep.subr.mxu0 0.0
  %291 = vmatpush1.msra.mxu0 0.0
  %292 = vmatprep.subr.mxu0 0.0
  %293 = vmatpush1.msra.mxu0 0.0
  %294 = vmatprep.subr.mxu0 0.0
  %295 = vmatpush1.msra.mxu0 0.0
  %296 = vmatprep.subr.mxu0 0.0
  %297 = vmatpush1.msra.mxu0 0.0
  %298 = vmatprep.subr.mxu0 0.0
  %299 = vmatpush1.msra.mxu0 0.0
  %300 = vmatprep.subr.mxu0 0.0
  %301 = vmatpush1.msra.mxu0 0.0
  %302 = vmatprep.subr.mxu0 0.0
  %303 = vmatpush1.msra.mxu0 0.0
  %304 = vmatprep.mubr.f32.mxu0 0.0
  %305 = vmatmul.mubr.f32.gmra.mrb[0].mxu0 %v238
  %v306 = vpop.f32.mrb[0].mxu0
  %v307 = vadd.f32 0.0, %v306
  %v308 = vpop.f32.mrb[0].mxu0
  %309 = vdwg.mxu0
  %v310 = vadd.f32 %v237, %v307
  %v311 = vxor.u32 %v310, 2147483648
  %v312 = vmul.f32 %v311, 1.442695
  %v313 = vpow.pop %v312
  %v314 = vadd.f32 %v313, 1.0
  %v315 = vrcp.pop %v314
  %v316 = vmul.f32 1.0, %v315
  %v317 = vtanh.pop %v310
  %v318 = vmul.f32 %v316, %v223
  %320 = vrot.lane.b32.xlu0 %v317, 64
  %v321 = vpop.permute.xlu0 %320
  %v323 = vmul.f32 %v316, %v321
  %325 = vrot.lane.b32.xlu0 %v323, 32
  %v326 = vpop.permute.xlu0 %325
  %v328 = vadd.f32 %v318, %v326
  %v329 = vtanh.pop %v328
  %331 = vrot.lane.b32.xlu0 %v329, 64
  %v332 = vpop.permute.xlu0 %331
  %v334 = vmul.f32 %v316, %v332
  %336 = vrot.lane.b32.xlu0 %v334, 32
  %v337 = vpop.permute.xlu0 %336
  %339 = vst.msk [vmem:[#allocation2 + $0x2] sm:$0x1] %vm128, %v337
  %s340 = sld [smem:[#allocation4 + $0x3]]
  %s341 = scalar_lea.vmem %s1, %s340
  %v342 = vld [vmem:[%s341] sm:$0x1]
  %v343 = vsel %vm25, %v337, 0
  %345 = vmatprep.subr.mxu0 0.0
  %346 = vmatpush1.msra.mxu0 %v18
  %347 = vmatprep.subr.mxu0 0.0
  %348 = vmatpush1.msra.mxu0 %v19
  %349 = vmatprep.subr.mxu0 0.0
  %350 = vmatpush1.msra.mxu0 %v20
  %351 = vmatprep.subr.mxu0 0.0
  %352 = vmatpush1.msra.mxu0 %v21
  %353 = vmatprep.subr.mxu0 0.0
  %354 = vmatpush1.msra.mxu0 0.0
  %355 = vmatprep.subr.mxu0 0.0
  %356 = vmatpush1.msra.mxu0 0.0
  %357 = vmatprep.subr.mxu0 0.0
  %358 = vmatpush1.msra.mxu0 0.0
  %359 = vmatprep.subr.mxu0 0.0
  %360 = vmatpush1.msra.mxu0 0.0
  %361 = vmatprep.subr.mxu0 0.0
  %362 = vmatpush1.msra.mxu0 0.0
  %363 = vmatprep.subr.mxu0 0.0
  %364 = vmatpush1.msra.mxu0 0.0
  %365 = vmatprep.subr.mxu0 0.0
  %366 = vmatpush1.msra.mxu0 0.0
  %367 = vmatprep.subr.mxu0 0.0
  %368 = vmatpush1.msra.mxu0 0.0
  %369 = vmatprep.subr.mxu0 0.0
  %370 = vmatpush1.msra.mxu0 0.0
  %371 = vmatprep.subr.mxu0 0.0
  %372 = vmatpush1.msra.mxu0 0.0
  %373 = vmatprep.subr.mxu0 0.0
  %374 = vmatpush1.msra.mxu0 0.0
  %375 = vmatprep.subr.mxu0 0.0
  %376 = vmatpush1.msra.mxu0 0.0
  %377 = vmatprep.subr.mxu0 0.0
  %378 = vmatpush1.msra.mxu0 0.0
  %379 = vmatprep.subr.mxu0 0.0
  %380 = vmatpush1.msra.mxu0 0.0
  %381 = vmatprep.subr.mxu0 0.0
  %382 = vmatpush1.msra.mxu0 0.0
  %383 = vmatprep.subr.mxu0 0.0
  %384 = vmatpush1.msra.mxu0 0.0
  %385 = vmatprep.subr.mxu0 0.0
  %386 = vmatpush1.msra.mxu0 0.0
  %387 = vmatprep.subr.mxu0 0.0
  %388 = vmatpush1.msra.mxu0 0.0
  %389 = vmatprep.subr.mxu0 0.0
  %390 = vmatpush1.msra.mxu0 0.0
  %391 = vmatprep.subr.mxu0 0.0
  %392 = vmatpush1.msra.mxu0 0.0
  %393 = vmatprep.subr.mxu0 0.0
  %394 = vmatpush1.msra.mxu0 0.0
  %395 = vmatprep.subr.mxu0 0.0
  %396 = vmatpush1.msra.mxu0 0.0
  %397 = vmatprep.subr.mxu0 0.0
  %398 = vmatpush1.msra.mxu0 0.0
  %399 = vmatprep.subr.mxu0 0.0
  %400 = vmatpush1.msra.mxu0 0.0
  %401 = vmatprep.subr.mxu0 0.0
  %402 = vmatpush1.msra.mxu0 0.0
  %403 = vmatprep.subr.mxu0 0.0
  %404 = vmatpush1.msra.mxu0 0.0
  %405 = vmatprep.subr.mxu0 0.0
  %406 = vmatpush1.msra.mxu0 0.0
  %407 = vmatprep.subr.mxu0 0.0
  %408 = vmatpush1.msra.mxu0 0.0
  %409 = vmatprep.mubr.f32.mxu0 0.0
  %410 = vmatmul.mubr.f32.gmra.mrb[0].mxu0 %v343
  %v411 = vpop.f32.mrb[0].mxu0
  %v412 = vadd.f32 0.0, %v411
  %v413 = vpop.f32.mrb[0].mxu0
  %414 = vdwg.mxu0
  %v415 = vadd.f32 %v342, %v412
  %v416 = vxor.u32 %v415, 2147483648
  %v417 = vmul.f32 %v416, 1.442695
  %v418 = vpow.pop %v417
  %v419 = vadd.f32 %v418, 1.0
  %v420 = vrcp.pop %v419
  %v421 = vmul.f32 1.0, %v420
  %v422 = vtanh.pop %v415
  %v423 = vmul.f32 %v421, %v328
  %425 = vrot.lane.b32.xlu0 %v422, 64
  %v426 = vpop.permute.xlu0 %425
  %v428 = vmul.f32 %v421, %v426
  %430 = vrot.lane.b32.xlu0 %v428, 32
  %v431 = vpop.permute.xlu0 %430
  %v433 = vadd.f32 %v423, %v431
  %v434 = vtanh.pop %v433
  %436 = vrot.lane.b32.xlu0 %v434, 64
  %v437 = vpop.permute.xlu0 %436
  %v439 = vmul.f32 %v421, %v437
  %441 = vrot.lane.b32.xlu0 %v439, 32
  %v442 = vpop.permute.xlu0 %441
  %444 = vst.msk [vmem:[#allocation2 + $0x3] sm:$0x1] %vm128, %v442
  %s445 = sld [smem:[#allocation4 + $0x4]]
  %s446 = scalar_lea.vmem %s1, %s445
  %v447 = vld [vmem:[%s446] sm:$0x1]
  %v448 = vsel %vm25, %v442, 0
  %450 = vmatprep.subr.mxu0 0.0
  %451 = vmatpush1.msra.mxu0 %v18
  %452 = vmatprep.subr.mxu0 0.0
  %453 = vmatpush1.msra.mxu0 %v19
  %454 = vmatprep.subr.mxu0 0.0
  %455 = vmatpush1.msra.mxu0 %v20
  %456 = vmatprep.subr.mxu0 0.0
  %457 = vmatpush1.msra.mxu0 %v21
  %458 = vmatprep.subr.mxu0 0.0
  %459 = vmatpush1.msra.mxu0 0.0
  %460 = vmatprep.subr.mxu0 0.0
  %461 = vmatpush1.msra.mxu0 0.0
  %462 = vmatprep.subr.mxu0 0.0
  %463 = vmatpush1.msra.mxu0 0.0
  %464 = vmatprep.subr.mxu0 0.0
  %465 = vmatpush1.msra.mxu0 0.0
  %466 = vmatprep.subr.mxu0 0.0
  %467 = vmatpush1.msra.mxu0 0.0
  %468 = vmatprep.subr.mxu0 0.0
  %469 = vmatpush1.msra.mxu0 0.0
  %470 = vmatprep.subr.mxu0 0.0
  %471 = vmatpush1.msra.mxu0 0.0
  %472 = vmatprep.subr.mxu0 0.0
  %473 = vmatpush1.msra.mxu0 0.0
  %474 = vmatprep.subr.mxu0 0.0
  %475 = vmatpush1.msra.mxu0 0.0
  %476 = vmatprep.subr.mxu0 0.0
  %477 = vmatpush1.msra.mxu0 0.0
  %478 = vmatprep.subr.mxu0 0.0
  %479 = vmatpush1.msra.mxu0 0.0
  %480 = vmatprep.subr.mxu0 0.0
  %481 = vmatpush1.msra.mxu0 0.0
  %482 = vmatprep.subr.mxu0 0.0
  %483 = vmatpush1.msra.mxu0 0.0
  %484 = vmatprep.subr.mxu0 0.0
  %485 = vmatpush1.msra.mxu0 0.0
  %486 = vmatprep.subr.mxu0 0.0
  %487 = vmatpush1.msra.mxu0 0.0
  %488 = vmatprep.subr.mxu0 0.0
  %489 = vmatpush1.msra.mxu0 0.0
  %490 = vmatprep.subr.mxu0 0.0
  %491 = vmatpush1.msra.mxu0 0.0
  %492 = vmatprep.subr.mxu0 0.0
  %493 = vmatpush1.msra.mxu0 0.0
  %494 = vmatprep.subr.mxu0 0.0
  %495 = vmatpush1.msra.mxu0 0.0
  %496 = vmatprep.subr.mxu0 0.0
  %497 = vmatpush1.msra.mxu0 0.0
  %498 = vmatprep.subr.mxu0 0.0
  %499 = vmatpush1.msra.mxu0 0.0
  %500 = vmatprep.subr.mxu0 0.0
  %501 = vmatpush1.msra.mxu0 0.0
  %502 = vmatprep.subr.mxu0 0.0
  %503 = vmatpush1.msra.mxu0 0.0
  %504 = vmatprep.subr.mxu0 0.0
  %505 = vmatpush1.msra.mxu0 0.0
  %506 = vmatprep.subr.mxu0 0.0
  %507 = vmatpush1.msra.mxu0 0.0
  %508 = vmatprep.subr.mxu0 0.0
  %509 = vmatpush1.msra.mxu0 0.0
  %510 = vmatprep.subr.mxu0 0.0
  %511 = vmatpush1.msra.mxu0 0.0
  %512 = vmatprep.subr.mxu0 0.0
  %513 = vmatpush1.msra.mxu0 0.0
  %514 = vmatprep.mubr.f32.mxu0 0.0
  %515 = vmatmul.mubr.f32.gmra.mrb[0].mxu0 %v448
  %v516 = vpop.f32.mrb[0].mxu0
  %v517 = vadd.f32 0.0, %v516
  %v518 = vpop.f32.mrb[0].mxu0
  %519 = vdwg.mxu0
  %v520 = vadd.f32 %v447, %v517
  %v521 = vxor.u32 %v520, 2147483648
  %v522 = vmul.f32 %v521, 1.442695
  %v523 = vpow.pop %v522
  %v524 = vadd.f32 %v523, 1.0
  %v525 = vrcp.pop %v524
  %v526 = vmul.f32 1.0, %v525
  %v527 = vtanh.pop %v520
  %v528 = vmul.f32 %v526, %v433
  %530 = vrot.lane.b32.xlu0 %v527, 64
  %v531 = vpop.permute.xlu0 %530
  %v533 = vmul.f32 %v526, %v531
  %535 = vrot.lane.b32.xlu0 %v533, 32
  %v536 = vpop.permute.xlu0 %535
  %v538 = vadd.f32 %v528, %v536
  %v539 = vtanh.pop %v538
  %541 = vrot.lane.b32.xlu0 %v539, 64
  %v542 = vpop.permute.xlu0 %541
  %v544 = vmul.f32 %v526, %v542
  %546 = vrot.lane.b32.xlu0 %v544, 32
  %v547 = vpop.permute.xlu0 %546
  %549 = vst.msk [vmem:[#allocation2 + $0x4] sm:$0x1] %vm128, %v547
  %s550 = sld [smem:[#allocation4 + $0x5]]
  %s551 = scalar_lea.vmem %s1, %s550
  %v552 = vld [vmem:[%s551] sm:$0x1]
  %v553 = vsel %vm25, %v547, 0
  %555 = vmatprep.subr.mxu0 0.0
  %556 = vmatpush1.msra.mxu0 %v18
  %557 = vmatprep.subr.mxu0 0.0
  %558 = vmatpush1.msra.mxu0 %v19
  %559 = vmatprep.subr.mxu0 0.0
  %560 = vmatpush1.msra.mxu0 %v20
  %561 = vmatprep.subr.mxu0 0.0
  %562 = vmatpush1.msra.mxu0 %v21
  %563 = vmatprep.subr.mxu0 0.0
  %564 = vmatpush1.msra.mxu0 0.0
  %565 = vmatprep.subr.mxu0 0.0
  %566 = vmatpush1.msra.mxu0 0.0
  %567 = vmatprep.subr.mxu0 0.0
  %568 = vmatpush1.msra.mxu0 0.0
  %569 = vmatprep.subr.mxu0 0.0
  %570 = vmatpush1.msra.mxu0 0.0
  %571 = vmatprep.subr.mxu0 0.0
  %572 = vmatpush1.msra.mxu0 0.0
  %573 = vmatprep.subr.mxu0 0.0
  %574 = vmatpush1.msra.mxu0 0.0
  %575 = vmatprep.subr.mxu0 0.0
  %576 = vmatpush1.msra.mxu0 0.0
  %577 = vmatprep.subr.mxu0 0.0
  %578 = vmatpush1.msra.mxu0 0.0
  %579 = vmatprep.subr.mxu0 0.0
  %580 = vmatpush1.msra.mxu0 0.0
  %581 = vmatprep.subr.mxu0 0.0
  %582 = vmatpush1.msra.mxu0 0.0
  %583 = vmatprep.subr.mxu0 0.0
  %584 = vmatpush1.msra.mxu0 0.0
  %585 = vmatprep.subr.mxu0 0.0
  %586 = vmatpush1.msra.mxu0 0.0
  %587 = vmatprep.subr.mxu0 0.0
  %588 = vmatpush1.msra.mxu0 0.0
  %589 = vmatprep.subr.mxu0 0.0
  %590 = vmatpush1.msra.mxu0 0.0
  %591 = vmatprep.subr.mxu0 0.0
  %592 = vmatpush1.msra.mxu0 0.0
  %593 = vmatprep.subr.mxu0 0.0
  %594 = vmatpush1.msra.mxu0 0.0
  %595 = vmatprep.subr.mxu0 0.0
  %596 = vmatpush1.msra.mxu0 0.0
  %597 = vmatprep.subr.mxu0 0.0
  %598 = vmatpush1.msra.mxu0 0.0
  %599 = vmatprep.subr.mxu0 0.0
  %600 = vmatpush1.msra.mxu0 0.0
  %601 = vmatprep.subr.mxu0 0.0
  %602 = vmatpush1.msra.mxu0 0.0
  %603 = vmatprep.subr.mxu0 0.0
  %604 = vmatpush1.msra.mxu0 0.0
  %605 = vmatprep.subr.mxu0 0.0
  %606 = vmatpush1.msra.mxu0 0.0
  %607 = vmatprep.subr.mxu0 0.0
  %608 = vmatpush1.msra.mxu0 0.0
  %609 = vmatprep.subr.mxu0 0.0
  %610 = vmatpush1.msra.mxu0 0.0
  %611 = vmatprep.subr.mxu0 0.0
  %612 = vmatpush1.msra.mxu0 0.0
  %613 = vmatprep.subr.mxu0 0.0
  %614 = vmatpush1.msra.mxu0 0.0
  %615 = vmatprep.subr.mxu0 0.0
  %616 = vmatpush1.msra.mxu0 0.0
  %617 = vmatprep.subr.mxu0 0.0
  %618 = vmatpush1.msra.mxu0 0.0
  %619 = vmatprep.mubr.f32.mxu0 0.0
  %620 = vmatmul.mubr.f32.gmra.mrb[0].mxu0 %v553
  %v621 = vpop.f32.mrb[0].mxu0
  %v622 = vadd.f32 0.0, %v621
  %v623 = vpop.f32.mrb[0].mxu0
  %624 = vdwg.mxu0
  %v625 = vadd.f32 %v552, %v622
  %v626 = vxor.u32 %v625, 2147483648
  %v627 = vmul.f32 %v626, 1.442695
  %v628 = vpow.pop %v627
  %v629 = vadd.f32 %v628, 1.0
  %v630 = vrcp.pop %v629
  %v631 = vmul.f32 1.0, %v630
  %v632 = vtanh.pop %v625
  %v633 = vmul.f32 %v631, %v538
  %635 = vrot.lane.b32.xlu0 %v632, 64
  %v636 = vpop.permute.xlu0 %635
  %v638 = vmul.f32 %v631, %v636
  %640 = vrot.lane.b32.xlu0 %v638, 32
  %v641 = vpop.permute.xlu0 %640
  %v643 = vadd.f32 %v633, %v641
  %v644 = vtanh.pop %v643
  %646 = vrot.lane.b32.xlu0 %v644, 64
  %v647 = vpop.permute.xlu0 %646
  %v649 = vmul.f32 %v631, %v647
  %651 = vrot.lane.b32.xlu0 %v649, 32
  %v652 = vpop.permute.xlu0 %651
  %654 = vst.msk [vmem:[#allocation2 + $0x5] sm:$0x1] %vm128, %v652
  %s655 = sld [smem:[#allocation4 + $0x6]]
  %s656 = scalar_lea.vmem %s1, %s655
  %v657 = vld [vmem:[%s656] sm:$0x1]
  %v658 = vsel %vm25, %v652, 0
  %660 = vmatprep.subr.mxu0 0.0
  %661 = vmatpush1.msra.mxu0 %v18
  %662 = vmatprep.subr.mxu0 0.0
  %663 = vmatpush1.msra.mxu0 %v19
  %664 = vmatprep.subr.mxu0 0.0
  %665 = vmatpush1.msra.mxu0 %v20
  %666 = vmatprep.subr.mxu0 0.0
  %667 = vmatpush1.msra.mxu0 %v21
  %668 = vmatprep.subr.mxu0 0.0
  %669 = vmatpush1.msra.mxu0 0.0
  %670 = vmatprep.subr.mxu0 0.0
  %671 = vmatpush1.msra.mxu0 0.0
  %672 = vmatprep.subr.mxu0 0.0
  %673 = vmatpush1.msra.mxu0 0.0
  %674 = vmatprep.subr.mxu0 0.0
  %675 = vmatpush1.msra.mxu0 0.0
  %676 = vmatprep.subr.mxu0 0.0
  %677 = vmatpush1.msra.mxu0 0.0
  %678 = vmatprep.subr.mxu0 0.0
  %679 = vmatpush1.msra.mxu0 0.0
  %680 = vmatprep.subr.mxu0 0.0
  %681 = vmatpush1.msra.mxu0 0.0
  %682 = vmatprep.subr.mxu0 0.0
  %683 = vmatpush1.msra.mxu0 0.0
  %684 = vmatprep.subr.mxu0 0.0
  %685 = vmatpush1.msra.mxu0 0.0
  %686 = vmatprep.subr.mxu0 0.0
  %687 = vmatpush1.msra.mxu0 0.0
  %688 = vmatprep.subr.mxu0 0.0
  %689 = vmatpush1.msra.mxu0 0.0
  %690 = vmatprep.subr.mxu0 0.0
  %691 = vmatpush1.msra.mxu0 0.0
  %692 = vmatprep.subr.mxu0 0.0
  %693 = vmatpush1.msra.mxu0 0.0
  %694 = vmatprep.subr.mxu0 0.0
  %695 = vmatpush1.msra.mxu0 0.0
  %696 = vmatprep.subr.mxu0 0.0
  %697 = vmatpush1.msra.mxu0 0.0
  %698 = vmatprep.subr.mxu0 0.0
  %699 = vmatpush1.msra.mxu0 0.0
  %700 = vmatprep.subr.mxu0 0.0
  %701 = vmatpush1.msra.mxu0 0.0
  %702 = vmatprep.subr.mxu0 0.0
  %703 = vmatpush1.msra.mxu0 0.0
  %704 = vmatprep.subr.mxu0 0.0
  %705 = vmatpush1.msra.mxu0 0.0
  %706 = vmatprep.subr.mxu0 0.0
  %707 = vmatpush1.msra.mxu0 0.0
  %708 = vmatprep.subr.mxu0 0.0
  %709 = vmatpush1.msra.mxu0 0.0
  %710 = vmatprep.subr.mxu0 0.0
  %711 = vmatpush1.msra.mxu0 0.0
  %712 = vmatprep.subr.mxu0 0.0
  %713 = vmatpush1.msra.mxu0 0.0
  %714 = vmatprep.subr.mxu0 0.0
  %715 = vmatpush1.msra.mxu0 0.0
  %716 = vmatprep.subr.mxu0 0.0
  %717 = vmatpush1.msra.mxu0 0.0
  %718 = vmatprep.subr.mxu0 0.0
  %719 = vmatpush1.msra.mxu0 0.0
  %720 = vmatprep.subr.mxu0 0.0
  %721 = vmatpush1.msra.mxu0 0.0
  %722 = vmatprep.subr.mxu0 0.0
  %723 = vmatpush1.msra.mxu0 0.0
  %724 = vmatprep.mubr.f32.mxu0 0.0
  %725 = vmatmul.mubr.f32.gmra.mrb[0].mxu0 %v658
  %v726 = vpop.f32.mrb[0].mxu0
  %v727 = vadd.f32 0.0, %v726
  %v728 = vpop.f32.mrb[0].mxu0
  %729 = vdwg.mxu0
  %v730 = vadd.f32 %v657, %v727
  %v731 = vxor.u32 %v730, 2147483648
  %v732 = vmul.f32 %v731, 1.442695
  %v733 = vpow.pop %v732
  %v734 = vadd.f32 %v733, 1.0
  %v735 = vrcp.pop %v734
  %v736 = vmul.f32 1.0, %v735
  %v737 = vtanh.pop %v730
  %v738 = vmul.f32 %v736, %v643
  %740 = vrot.lane.b32.xlu0 %v737, 64
  %v741 = vpop.permute.xlu0 %740
  %v743 = vmul.f32 %v736, %v741
  %745 = vrot.lane.b32.xlu0 %v743, 32
  %v746 = vpop.permute.xlu0 %745
  %v748 = vadd.f32 %v738, %v746
  %v749 = vtanh.pop %v748
  %751 = vrot.lane.b32.xlu0 %v749, 64
  %v752 = vpop.permute.xlu0 %751
  %v754 = vmul.f32 %v736, %v752
  %756 = vrot.lane.b32.xlu0 %v754, 32
  %v757 = vpop.permute.xlu0 %756
  %759 = vst.msk [vmem:[#allocation2 + $0x6] sm:$0x1] %vm128, %v757
  %s760 = sld [smem:[#allocation4 + $0x7]]
  %s761 = scalar_lea.vmem %s1, %s760
  %v762 = vld [vmem:[%s761] sm:$0x1]
  %v763 = vsel %vm25, %v757, 0
  %765 = vmatprep.subr.mxu0 0.0
  %766 = vmatpush1.msra.mxu0 %v18
  %767 = vmatprep.subr.mxu0 0.0
  %768 = vmatpush1.msra.mxu0 %v19
  %769 = vmatprep.subr.mxu0 0.0
  %770 = vmatpush1.msra.mxu0 %v20
  %771 = vmatprep.subr.mxu0 0.0
  %772 = vmatpush1.msra.mxu0 %v21
  %773 = vmatprep.subr.mxu0 0.0
  %774 = vmatpush1.msra.mxu0 0.0
  %775 = vmatprep.subr.mxu0 0.0
  %776 = vmatpush1.msra.mxu0 0.0
  %777 = vmatprep.subr.mxu0 0.0
  %778 = vmatpush1.msra.mxu0 0.0
  %779 = vmatprep.subr.mxu0 0.0
  %780 = vmatpush1.msra.mxu0 0.0
  %781 = vmatprep.subr.mxu0 0.0
  %782 = vmatpush1.msra.mxu0 0.0
  %783 = vmatprep.subr.mxu0 0.0
  %784 = vmatpush1.msra.mxu0 0.0
  %785 = vmatprep.subr.mxu0 0.0
  %786 = vmatpush1.msra.mxu0 0.0
  %787 = vmatprep.subr.mxu0 0.0
  %788 = vmatpush1.msra.mxu0 0.0
  %789 = vmatprep.subr.mxu0 0.0
  %790 = vmatpush1.msra.mxu0 0.0
  %791 = vmatprep.subr.mxu0 0.0
  %792 = vmatpush1.msra.mxu0 0.0
  %793 = vmatprep.subr.mxu0 0.0
  %794 = vmatpush1.msra.mxu0 0.0
  %795 = vmatprep.subr.mxu0 0.0
  %796 = vmatpush1.msra.mxu0 0.0
  %797 = vmatprep.subr.mxu0 0.0
  %798 = vmatpush1.msra.mxu0 0.0
  %799 = vmatprep.subr.mxu0 0.0
  %800 = vmatpush1.msra.mxu0 0.0
  %801 = vmatprep.subr.mxu0 0.0
  %802 = vmatpush1.msra.mxu0 0.0
  %803 = vmatprep.subr.mxu0 0.0
  %804 = vmatpush1.msra.mxu0 0.0
  %805 = vmatprep.subr.mxu0 0.0
  %806 = vmatpush1.msra.mxu0 0.0
  %807 = vmatprep.subr.mxu0 0.0
  %808 = vmatpush1.msra.mxu0 0.0
  %809 = vmatprep.subr.mxu0 0.0
  %810 = vmatpush1.msra.mxu0 0.0
  %811 = vmatprep.subr.mxu0 0.0
  %812 = vmatpush1.msra.mxu0 0.0
  %813 = vmatprep.subr.mxu0 0.0
  %814 = vmatpush1.msra.mxu0 0.0
  %815 = vmatprep.subr.mxu0 0.0
  %816 = vmatpush1.msra.mxu0 0.0
  %817 = vmatprep.subr.mxu0 0.0
  %818 = vmatpush1.msra.mxu0 0.0
  %819 = vmatprep.subr.mxu0 0.0
  %820 = vmatpush1.msra.mxu0 0.0
  %821 = vmatprep.subr.mxu0 0.0
  %822 = vmatpush1.msra.mxu0 0.0
  %823 = vmatprep.subr.mxu0 0.0
  %824 = vmatpush1.msra.mxu0 0.0
  %825 = vmatprep.subr.mxu0 0.0
  %826 = vmatpush1.msra.mxu0 0.0
  %827 = vmatprep.subr.mxu0 0.0
  %828 = vmatpush1.msra.mxu0 0.0
  %829 = vmatprep.mubr.f32.mxu0 0.0
  %830 = vmatmul.mubr.f32.gmra.mrb[0].mxu0 %v763
  %v831 = vpop.f32.mrb[0].mxu0
  %v832 = vadd.f32 0.0, %v831
  %v833 = vpop.f32.mrb[0].mxu0
  %834 = vdwg.mxu0
  %v835 = vadd.f32 %v762, %v832
  %v836 = vxor.u32 %v835, 2147483648
  %v837 = vmul.f32 %v836, 1.442695
  %v838 = vpow.pop %v837
  %v839 = vadd.f32 %v838, 1.0
  %v840 = vrcp.pop %v839
  %v841 = vmul.f32 1.0, %v840
  %v842 = vtanh.pop %v835
  %v843 = vmul.f32 %v841, %v748
  %845 = vrot.lane.b32.xlu0 %v842, 64
  %v846 = vpop.permute.xlu0 %845
  %v848 = vmul.f32 %v841, %v846
  %850 = vrot.lane.b32.xlu0 %v848, 32
  %v851 = vpop.permute.xlu0 %850
  %v853 = vadd.f32 %v843, %v851
  %v854 = vtanh.pop %v853
  %856 = vrot.lane.b32.xlu0 %v854, 64
  %v857 = vpop.permute.xlu0 %856
  %v859 = vmul.f32 %v841, %v857
  %861 = vrot.lane.b32.xlu0 %v859, 32
  %v862 = vpop.permute.xlu0 %861
  %864 = vst.msk [vmem:[#allocation2 + $0x7] sm:$0x1] %vm128, %v862
  %s865 = sld [smem:[#allocation4 + $0x8]]
  %s866 = scalar_lea.vmem %s1, %s865
  %v867 = vld [vmem:[%s866] sm:$0x1]
  %v868 = vsel %vm25, %v862, 0
  %870 = vmatprep.subr.mxu0 0.0
  %871 = vmatpush1.msra.mxu0 %v18
  %872 = vmatprep.subr.mxu0 0.0
  %873 = vmatpush1.msra.mxu0 %v19
  %874 = vmatprep.subr.mxu0 0.0
  %875 = vmatpush1.msra.mxu0 %v20
  %876 = vmatprep.subr.mxu0 0.0
  %877 = vmatpush1.msra.mxu0 %v21
  %878 = vmatprep.subr.mxu0 0.0
  %879 = vmatpush1.msra.mxu0 0.0
  %880 = vmatprep.subr.mxu0 0.0
  %881 = vmatpush1.msra.mxu0 0.0
  %882 = vmatprep.subr.mxu0 0.0
  %883 = vmatpush1.msra.mxu0 0.0
  %884 = vmatprep.subr.mxu0 0.0
  %885 = vmatpush1.msra.mxu0 0.0
  %886 = vmatprep.subr.mxu0 0.0
  %887 = vmatpush1.msra.mxu0 0.0
  %888 = vmatprep.subr.mxu0 0.0
  %889 = vmatpush1.msra.mxu0 0.0
  %890 = vmatprep.subr.mxu0 0.0
  %891 = vmatpush1.msra.mxu0 0.0
  %892 = vmatprep.subr.mxu0 0.0
  %893 = vmatpush1.msra.mxu0 0.0
  %894 = vmatprep.subr.mxu0 0.0
  %895 = vmatpush1.msra.mxu0 0.0
  %896 = vmatprep.subr.mxu0 0.0
  %897 = vmatpush1.msra.mxu0 0.0
  %898 = vmatprep.subr.mxu0 0.0
  %899 = vmatpush1.msra.mxu0 0.0
  %900 = vmatprep.subr.mxu0 0.0
  %901 = vmatpush1.msra.mxu0 0.0
  %902 = vmatprep.subr.mxu0 0.0
  %903 = vmatpush1.msra.mxu0 0.0
  %904 = vmatprep.subr.mxu0 0.0
  %905 = vmatpush1.msra.mxu0 0.0
  %906 = vmatprep.subr.mxu0 0.0
  %907 = vmatpush1.msra.mxu0 0.0
  %908 = vmatprep.subr.mxu0 0.0
  %909 = vmatpush1.msra.mxu0 0.0
  %910 = vmatprep.subr.mxu0 0.0
  %911 = vmatpush1.msra.mxu0 0.0
  %912 = vmatprep.subr.mxu0 0.0
  %913 = vmatpush1.msra.mxu0 0.0
  %914 = vmatprep.subr.mxu0 0.0
  %915 = vmatpush1.msra.mxu0 0.0
  %916 = vmatprep.subr.mxu0 0.0
  %917 = vmatpush1.msra.mxu0 0.0
  %918 = vmatprep.subr.mxu0 0.0
  %919 = vmatpush1.msra.mxu0 0.0
  %920 = vmatprep.subr.mxu0 0.0
  %921 = vmatpush1.msra.mxu0 0.0
  %922 = vmatprep.subr.mxu0 0.0
  %923 = vmatpush1.msra.mxu0 0.0
  %924 = vmatprep.subr.mxu0 0.0
  %925 = vmatpush1.msra.mxu0 0.0
  %926 = vmatprep.subr.mxu0 0.0
  %927 = vmatpush1.msra.mxu0 0.0
  %928 = vmatprep.subr.mxu0 0.0
  %929 = vmatpush1.msra.mxu0 0.0
  %930 = vmatprep.subr.mxu0 0.0
  %931 = vmatpush1.msra.mxu0 0.0
  %932 = vmatprep.subr.mxu0 0.0
  %933 = vmatpush1.msra.mxu0 0.0
  %934 = vmatprep.mubr.f32.mxu0 0.0
  %935 = vmatmul.mubr.f32.gmra.mrb[0].mxu0 %v868
  %v936 = vpop.f32.mrb[0].mxu0
  %v937 = vadd.f32 0.0, %v936
  %v938 = vpop.f32.mrb[0].mxu0
  %939 = vdwg.mxu0
  %v940 = vadd.f32 %v867, %v937
  %v941 = vxor.u32 %v940, 2147483648
  %v942 = vmul.f32 %v941, 1.442695
  %v943 = vpow.pop %v942
  %v944 = vadd.f32 %v943, 1.0
  %v945 = vrcp.pop %v944
  %v946 = vmul.f32 1.0, %v945
  %v947 = vtanh.pop %v940
  %v948 = vmul.f32 %v946, %v853
  %950 = vrot.lane.b32.xlu0 %v947, 64
  %v951 = vpop.permute.xlu0 %950
  %v953 = vmul.f32 %v946, %v951
  %955 = vrot.lane.b32.xlu0 %v953, 32
  %v956 = vpop.permute.xlu0 %955
  %v958 = vadd.f32 %v948, %v956
  %v959 = vtanh.pop %v958
  %961 = vrot.lane.b32.xlu0 %v959, 64
  %v962 = vpop.permute.xlu0 %961
  %v964 = vmul.f32 %v946, %v962
  %966 = vrot.lane.b32.xlu0 %v964, 32
  %v967 = vpop.permute.xlu0 %966
  %969 = vst.msk [vmem:[#allocation2 + $0x8] sm:$0x1] %vm128, %v967
  %s970 = sld [smem:[#allocation4 + $0x9]]
  %s971 = scalar_lea.vmem %s1, %s970
  %v972 = vld [vmem:[%s971] sm:$0x1]
  %v973 = vsel %vm25, %v967, 0
  %975 = vmatprep.subr.mxu0 0.0
  %976 = vmatpush1.msra.mxu0 %v18
  %977 = vmatprep.subr.mxu0 0.0
  %978 = vmatpush1.msra.mxu0 %v19
  %979 = vmatprep.subr.mxu0 0.0
  %980 = vmatpush1.msra.mxu0 %v20
  %981 = vmatprep.subr.mxu0 0.0
  %982 = vmatpush1.msra.mxu0 %v21
  %983 = vmatprep.subr.mxu0 0.0
  %984 = vmatpush1.msra.mxu0 0.0
  %985 = vmatprep.subr.mxu0 0.0
  %986 = vmatpush1.msra.mxu0 0.0
  %987 = vmatprep.subr.mxu0 0.0
  %988 = vmatpush1.msra.mxu0 0.0
  %989 = vmatprep.subr.mxu0 0.0
  %990 = vmatpush1.msra.mxu0 0.0
  %991 = vmatprep.subr.mxu0 0.0
  %992 = vmatpush1.msra.mxu0 0.0
  %993 = vmatprep.subr.mxu0 0.0
  %994 = vmatpush1.msra.mxu0 0.0
  %995 = vmatprep.subr.mxu0 0.0
  %996 = vmatpush1.msra.mxu0 0.0
  %997 = vmatprep.subr.mxu0 0.0
  %998 = vmatpush1.msra.mxu0 0.0
  %999 = vmatprep.subr.mxu0 0.0
  %1000 = vmatpush1.msra.mxu0 0.0
  %1001 = vmatprep.subr.mxu0 0.0
  %1002 = vmatpush1.msra.mxu0 0.0
  %1003 = vmatprep.subr.mxu0 0.0
  %1004 = vmatpush1.msra.mxu0 0.0
  %1005 = vmatprep.subr.mxu0 0.0
  %1006 = vmatpush1.msra.mxu0 0.0
  %1007 = vmatprep.subr.mxu0 0.0
  %1008 = vmatpush1.msra.mxu0 0.0
  %1009 = vmatprep.subr.mxu0 0.0
  %1010 = vmatpush1.msra.mxu0 0.0
  %1011 = vmatprep.subr.mxu0 0.0
  %1012 = vmatpush1.msra.mxu0 0.0
  %1013 = vmatprep.subr.mxu0 0.0
  %1014 = vmatpush1.msra.mxu0 0.0
  %1015 = vmatprep.subr.mxu0 0.0
  %1016 = vmatpush1.msra.mxu0 0.0
  %1017 = vmatprep.subr.mxu0 0.0
  %1018 = vmatpush1.msra.mxu0 0.0
  %1019 = vmatprep.subr.mxu0 0.0
  %1020 = vmatpush1.msra.mxu0 0.0
  %1021 = vmatprep.subr.mxu0 0.0
  %1022 = vmatpush1.msra.mxu0 0.0
  %1023 = vmatprep.subr.mxu0 0.0
  %1024 = vmatpush1.msra.mxu0 0.0
  %1025 = vmatprep.subr.mxu0 0.0
  %1026 = vmatpush1.msra.mxu0 0.0
  %1027 = vmatprep.subr.mxu0 0.0
  %1028 = vmatpush1.msra.mxu0 0.0
  %1029 = vmatprep.subr.mxu0 0.0
  %1030 = vmatpush1.msra.mxu0 0.0
  %1031 = vmatprep.subr.mxu0 0.0
  %1032 = vmatpush1.msra.mxu0 0.0
  %1033 = vmatprep.subr.mxu0 0.0
  %1034 = vmatpush1.msra.mxu0 0.0
  %1035 = vmatprep.subr.mxu0 0.0
  %1036 = vmatpush1.msra.mxu0 0.0
  %1037 = vmatprep.subr.mxu0 0.0
  %1038 = vmatpush1.msra.mxu0 0.0
  %1039 = vmatprep.mubr.f32.mxu0 0.0
  %1040 = vmatmul.mubr.f32.gmra.mrb[0].mxu0 %v973
  %v1041 = vpop.f32.mrb[0].mxu0
  %v1042 = vadd.f32 0.0, %v1041
  %v1043 = vpop.f32.mrb[0].mxu0
  %1044 = vdwg.mxu0
  %v1045 = vadd.f32 %v972, %v1042
  %v1046 = vxor.u32 %v1045, 2147483648
  %v1047 = vmul.f32 %v1046, 1.442695
  %v1048 = vpow.pop %v1047
  %v1049 = vadd.f32 %v1048, 1.0
  %v1050 = vrcp.pop %v1049
  %v1051 = vmul.f32 1.0, %v1050
  %v1052 = vtanh.pop %v1045
  %v1053 = vmul.f32 %v1051, %v958
  %1055 = vrot.lane.b32.xlu0 %v1052, 64
  %v1056 = vpop.permute.xlu0 %1055
  %v1058 = vmul.f32 %v1051, %v1056
  %1060 = vrot.lane.b32.xlu0 %v1058, 32
  %v1061 = vpop.permute.xlu0 %1060
  %v1063 = vadd.f32 %v1053, %v1061
  %v1064 = vtanh.pop %v1063
  %1066 = vrot.lane.b32.xlu0 %v1064, 64
  %v1067 = vpop.permute.xlu0 %1066
  %v1069 = vmul.f32 %v1051, %v1067
  %1071 = vrot.lane.b32.xlu0 %v1069, 32
  %v1072 = vpop.permute.xlu0 %1071
  %1074 = vst.msk [vmem:[#allocation2 + $0x9] sm:$0x1] %vm128, %v1072
  %s1075 = sld [smem:[#allocation4 + $0xa]]
  %s1076 = scalar_lea.vmem %s1, %s1075
  %v1077 = vld [vmem:[%s1076] sm:$0x1]
  %v1078 = vsel %vm25, %v1072, 0
  %1080 = vmatprep.subr.mxu0 0.0
  %1081 = vmatpush1.msra.mxu0 %v18
  %1082 = vmatprep.subr.mxu0 0.0
  %1083 = vmatpush1.msra.mxu0 %v19
  %1084 = vmatprep.subr.mxu0 0.0
  %1085 = vmatpush1.msra.mxu0 %v20
  %1086 = vmatprep.subr.mxu0 0.0
  %1087 = vmatpush1.msra.mxu0 %v21
  %1088 = vmatprep.subr.mxu0 0.0
  %1089 = vmatpush1.msra.mxu0 0.0
  %1090 = vmatprep.subr.mxu0 0.0
  %1091 = vmatpush1.msra.mxu0 0.0
  %1092 = vmatprep.subr.mxu0 0.0
  %1093 = vmatpush1.msra.mxu0 0.0
  %1094 = vmatprep.subr.mxu0 0.0
  %1095 = vmatpush1.msra.mxu0 0.0
  %1096 = vmatprep.subr.mxu0 0.0
  %1097 = vmatpush1.msra.mxu0 0.0
  %1098 = vmatprep.subr.mxu0 0.0
  %1099 = vmatpush1.msra.mxu0 0.0
  %1100 = vmatprep.subr.mxu0 0.0
  %1101 = vmatpush1.msra.mxu0 0.0
  %1102 = vmatprep.subr.mxu0 0.0
  %1103 = vmatpush1.msra.mxu0 0.0
  %1104 = vmatprep.subr.mxu0 0.0
  %1105 = vmatpush1.msra.mxu0 0.0
  %1106 = vmatprep.subr.mxu0 0.0
  %1107 = vmatpush1.msra.mxu0 0.0
  %1108 = vmatprep.subr.mxu0 0.0
  %1109 = vmatpush1.msra.mxu0 0.0
  %1110 = vmatprep.subr.mxu0 0.0
  %1111 = vmatpush1.msra.mxu0 0.0
  %1112 = vmatprep.subr.mxu0 0.0
  %1113 = vmatpush1.msra.mxu0 0.0
  %1114 = vmatprep.subr.mxu0 0.0
  %1115 = vmatpush1.msra.mxu0 0.0
  %1116 = vmatprep.subr.mxu0 0.0
  %1117 = vmatpush1.msra.mxu0 0.0
  %1118 = vmatprep.subr.mxu0 0.0
  %1119 = vmatpush1.msra.mxu0 0.0
  %1120 = vmatprep.subr.mxu0 0.0
  %1121 = vmatpush1.msra.mxu0 0.0
  %1122 = vmatprep.subr.mxu0 0.0
  %1123 = vmatpush1.msra.mxu0 0.0
  %1124 = vmatprep.subr.mxu0 0.0
  %1125 = vmatpush1.msra.mxu0 0.0
  %1126 = vmatprep.subr.mxu0 0.0
  %1127 = vmatpush1.msra.mxu0 0.0
  %1128 = vmatprep.subr.mxu0 0.0
  %1129 = vmatpush1.msra.mxu0 0.0
  %1130 = vmatprep.subr.mxu0 0.0
  %1131 = vmatpush1.msra.mxu0 0.0
  %1132 = vmatprep.subr.mxu0 0.0
  %1133 = vmatpush1.msra.mxu0 0.0
  %1134 = vmatprep.subr.mxu0 0.0
  %1135 = vmatpush1.msra.mxu0 0.0
  %1136 = vmatprep.subr.mxu0 0.0
  %1137 = vmatpush1.msra.mxu0 0.0
  %1138 = vmatprep.subr.mxu0 0.0
  %1139 = vmatpush1.msra.mxu0 0.0
  %1140 = vmatprep.subr.mxu0 0.0
  %1141 = vmatpush1.msra.mxu0 0.0
  %1142 = vmatprep.subr.mxu0 0.0
  %1143 = vmatpush1.msra.mxu0 0.0
  %1144 = vmatprep.mubr.f32.mxu0 0.0
  %1145 = vmatmul.mubr.f32.gmra.mrb[0].mxu0 %v1078
  %v1146 = vpop.f32.mrb[0].mxu0
  %v1147 = vadd.f32 0.0, %v1146
  %v1148 = vpop.f32.mrb[0].mxu0
  %1149 = vdwg.mxu0
  %v1150 = vadd.f32 %v1077, %v1147
  %v1151 = vxor.u32 %v1150, 2147483648
  %v1152 = vmul.f32 %v1151, 1.442695
  %v1153 = vpow.pop %v1152
  %v1154 = vadd.f32 %v1153, 1.0
  %v1155 = vrcp.pop %v1154
  %v1156 = vmul.f32 1.0, %v1155
  %v1157 = vtanh.pop %v1150
  %v1158 = vmul.f32 %v1156, %v1063
  %1160 = vrot.lane.b32.xlu0 %v1157, 64
  %v1161 = vpop.permute.xlu0 %1160
  %v1163 = vmul.f32 %v1156, %v1161
  %1165 = vrot.lane.b32.xlu0 %v1163, 32
  %v1166 = vpop.permute.xlu0 %1165
  %v1168 = vadd.f32 %v1158, %v1166
  %v1169 = vtanh.pop %v1168
  %1171 = vrot.lane.b32.xlu0 %v1169, 64
  %v1172 = vpop.permute.xlu0 %1171
  %v1174 = vmul.f32 %v1156, %v1172
  %1176 = vrot.lane.b32.xlu0 %v1174, 32
  %v1177 = vpop.permute.xlu0 %1176
  %1179 = vst.msk [vmem:[#allocation2 + $0xa] sm:$0x1] %vm128, %v1177
  %s1180 = sld [smem:[#allocation4 + $0xb]]
  %s1181 = scalar_lea.vmem %s1, %s1180
  %v1182 = vld [vmem:[%s1181] sm:$0x1]
  %v1183 = vsel %vm25, %v1177, 0
  %1185 = vmatprep.subr.mxu0 0.0
  %1186 = vmatpush1.msra.mxu0 %v18
  %1187 = vmatprep.subr.mxu0 0.0
  %1188 = vmatpush1.msra.mxu0 %v19
  %1189 = vmatprep.subr.mxu0 0.0
  %1190 = vmatpush1.msra.mxu0 %v20
  %1191 = vmatprep.subr.mxu0 0.0
  %1192 = vmatpush1.msra.mxu0 %v21
  %1193 = vmatprep.subr.mxu0 0.0
  %1194 = vmatpush1.msra.mxu0 0.0
  %1195 = vmatprep.subr.mxu0 0.0
  %1196 = vmatpush1.msra.mxu0 0.0
  %1197 = vmatprep.subr.mxu0 0.0
  %1198 = vmatpush1.msra.mxu0 0.0
  %1199 = vmatprep.subr.mxu0 0.0
  %1200 = vmatpush1.msra.mxu0 0.0
  %1201 = vmatprep.subr.mxu0 0.0
  %1202 = vmatpush1.msra.mxu0 0.0
  %1203 = vmatprep.subr.mxu0 0.0
  %1204 = vmatpush1.msra.mxu0 0.0
  %1205 = vmatprep.subr.mxu0 0.0
  %1206 = vmatpush1.msra.mxu0 0.0
  %1207 = vmatprep.subr.mxu0 0.0
  %1208 = vmatpush1.msra.mxu0 0.0
  %1209 = vmatprep.subr.mxu0 0.0
  %1210 = vmatpush1.msra.mxu0 0.0
  %1211 = vmatprep.subr.mxu0 0.0
  %1212 = vmatpush1.msra.mxu0 0.0
  %1213 = vmatprep.subr.mxu0 0.0
  %1214 = vmatpush1.msra.mxu0 0.0
  %1215 = vmatprep.subr.mxu0 0.0
  %1216 = vmatpush1.msra.mxu0 0.0
  %1217 = vmatprep.subr.mxu0 0.0
  %1218 = vmatpush1.msra.mxu0 0.0
  %1219 = vmatprep.subr.mxu0 0.0
  %1220 = vmatpush1.msra.mxu0 0.0
  %1221 = vmatprep.subr.mxu0 0.0
  %1222 = vmatpush1.msra.mxu0 0.0
  %1223 = vmatprep.subr.mxu0 0.0
  %1224 = vmatpush1.msra.mxu0 0.0
  %1225 = vmatprep.subr.mxu0 0.0
  %1226 = vmatpush1.msra.mxu0 0.0
  %1227 = vmatprep.subr.mxu0 0.0
  %1228 = vmatpush1.msra.mxu0 0.0
  %1229 = vmatprep.subr.mxu0 0.0
  %1230 = vmatpush1.msra.mxu0 0.0
  %1231 = vmatprep.subr.mxu0 0.0
  %1232 = vmatpush1.msra.mxu0 0.0
  %1233 = vmatprep.subr.mxu0 0.0
  %1234 = vmatpush1.msra.mxu0 0.0
  %1235 = vmatprep.subr.mxu0 0.0
  %1236 = vmatpush1.msra.mxu0 0.0
  %1237 = vmatprep.subr.mxu0 0.0
  %1238 = vmatpush1.msra.mxu0 0.0
  %1239 = vmatprep.subr.mxu0 0.0
  %1240 = vmatpush1.msra.mxu0 0.0
  %1241 = vmatprep.subr.mxu0 0.0
  %1242 = vmatpush1.msra.mxu0 0.0
  %1243 = vmatprep.subr.mxu0 0.0
  %1244 = vmatpush1.msra.mxu0 0.0
  %1245 = vmatprep.subr.mxu0 0.0
  %1246 = vmatpush1.msra.mxu0 0.0
  %1247 = vmatprep.subr.mxu0 0.0
  %1248 = vmatpush1.msra.mxu0 0.0
  %1249 = vmatprep.mubr.f32.mxu0 0.0
  %1250 = vmatmul.mubr.f32.gmra.mrb[0].mxu0 %v1183
  %v1251 = vpop.f32.mrb[0].mxu0
  %v1252 = vadd.f32 0.0, %v1251
  %v1253 = vpop.f32.mrb[0].mxu0
  %1254 = vdwg.mxu0
  %v1255 = vadd.f32 %v1182, %v1252
  %v1256 = vxor.u32 %v1255, 2147483648
  %v1257 = vmul.f32 %v1256, 1.442695
  %v1258 = vpow.pop %v1257
  %v1259 = vadd.f32 %v1258, 1.0
  %v1260 = vrcp.pop %v1259
  %v1261 = vmul.f32 1.0, %v1260
  %v1262 = vtanh.pop %v1255
  %v1263 = vmul.f32 %v1261, %v1168
  %1265 = vrot.lane.b32.xlu0 %v1262, 64
  %v1266 = vpop.permute.xlu0 %1265
  %v1268 = vmul.f32 %v1261, %v1266
  %1270 = vrot.lane.b32.xlu0 %v1268, 32
  %v1271 = vpop.permute.xlu0 %1270
  %v1273 = vadd.f32 %v1263, %v1271
  %v1274 = vtanh.pop %v1273
  %1276 = vrot.lane.b32.xlu0 %v1274, 64
  %v1277 = vpop.permute.xlu0 %1276
  %v1279 = vmul.f32 %v1261, %v1277
  %1281 = vrot.lane.b32.xlu0 %v1279, 32
  %v1282 = vpop.permute.xlu0 %1281
  %1284 = vst.msk [vmem:[#allocation2 + $0xb] sm:$0x1] %vm128, %v1282
  %s1285 = sld [smem:[#allocation4 + $0xc]]
  %s1286 = scalar_lea.vmem %s1, %s1285
  %v1287 = vld [vmem:[%s1286] sm:$0x1]
  %v1288 = vsel %vm25, %v1282, 0
  %1290 = vmatprep.subr.mxu0 0.0
  %1291 = vmatpush1.msra.mxu0 %v18
  %1292 = vmatprep.subr.mxu0 0.0
  %1293 = vmatpush1.msra.mxu0 %v19
  %1294 = vmatprep.subr.mxu0 0.0
  %1295 = vmatpush1.msra.mxu0 %v20
  %1296 = vmatprep.subr.mxu0 0.0
  %1297 = vmatpush1.msra.mxu0 %v21
  %1298 = vmatprep.subr.mxu0 0.0
  %1299 = vmatpush1.msra.mxu0 0.0
  %1300 = vmatprep.subr.mxu0 0.0
  %1301 = vmatpush1.msra.mxu0 0.0
  %1302 = vmatprep.subr.mxu0 0.0
  %1303 = vmatpush1.msra.mxu0 0.0
  %1304 = vmatprep.subr.mxu0 0.0
  %1305 = vmatpush1.msra.mxu0 0.0
  %1306 = vmatprep.subr.mxu0 0.0
  %1307 = vmatpush1.msra.mxu0 0.0
  %1308 = vmatprep.subr.mxu0 0.0
  %1309 = vmatpush1.msra.mxu0 0.0
  %1310 = vmatprep.subr.mxu0 0.0
  %1311 = vmatpush1.msra.mxu0 0.0
  %1312 = vmatprep.subr.mxu0 0.0
  %1313 = vmatpush1.msra.mxu0 0.0
  %1314 = vmatprep.subr.mxu0 0.0
  %1315 = vmatpush1.msra.mxu0 0.0
  %1316 = vmatprep.subr.mxu0 0.0
  %1317 = vmatpush1.msra.mxu0 0.0
  %1318 = vmatprep.subr.mxu0 0.0
  %1319 = vmatpush1.msra.mxu0 0.0
  %1320 = vmatprep.subr.mxu0 0.0
  %1321 = vmatpush1.msra.mxu0 0.0
  %1322 = vmatprep.subr.mxu0 0.0
  %1323 = vmatpush1.msra.mxu0 0.0
  %1324 = vmatprep.subr.mxu0 0.0
  %1325 = vmatpush1.msra.mxu0 0.0
  %1326 = vmatprep.subr.mxu0 0.0
  %1327 = vmatpush1.msra.mxu0 0.0
  %1328 = vmatprep.subr.mxu0 0.0
  %1329 = vmatpush1.msra.mxu0 0.0
  %1330 = vmatprep.subr.mxu0 0.0
  %1331 = vmatpush1.msra.mxu0 0.0
  %1332 = vmatprep.subr.mxu0 0.0
  %1333 = vmatpush1.msra.mxu0 0.0
  %1334 = vmatprep.subr.mxu0 0.0
  %1335 = vmatpush1.msra.mxu0 0.0
  %1336 = vmatprep.subr.mxu0 0.0
  %1337 = vmatpush1.msra.mxu0 0.0
  %1338 = vmatprep.subr.mxu0 0.0
  %1339 = vmatpush1.msra.mxu0 0.0
  %1340 = vmatprep.subr.mxu0 0.0
  %1341 = vmatpush1.msra.mxu0 0.0
  %1342 = vmatprep.subr.mxu0 0.0
  %1343 = vmatpush1.msra.mxu0 0.0
  %1344 = vmatprep.subr.mxu0 0.0
  %1345 = vmatpush1.msra.mxu0 0.0
  %1346 = vmatprep.subr.mxu0 0.0
  %1347 = vmatpush1.msra.mxu0 0.0
  %1348 = vmatprep.subr.mxu0 0.0
  %1349 = vmatpush1.msra.mxu0 0.0
  %1350 = vmatprep.subr.mxu0 0.0
  %1351 = vmatpush1.msra.mxu0 0.0
  %1352 = vmatprep.subr.mxu0 0.0
  %1353 = vmatpush1.msra.mxu0 0.0
  %1354 = vmatprep.mubr.f32.mxu0 0.0
  %1355 = vmatmul.mubr.f32.gmra.mrb[0].mxu0 %v1288
  %v1356 = vpop.f32.mrb[0].mxu0
  %v1357 = vadd.f32 0.0, %v1356
  %v1358 = vpop.f32.mrb[0].mxu0
  %1359 = vdwg.mxu0
  %v1360 = vadd.f32 %v1287, %v1357
  %v1361 = vxor.u32 %v1360, 2147483648
  %v1362 = vmul.f32 %v1361, 1.442695
  %v1363 = vpow.pop %v1362
  %v1364 = vadd.f32 %v1363, 1.0
  %v1365 = vrcp.pop %v1364
  %v1366 = vmul.f32 1.0, %v1365
  %v1367 = vtanh.pop %v1360
  %v1368 = vmul.f32 %v1366, %v1273
  %1370 = vrot.lane.b32.xlu0 %v1367, 64
  %v1371 = vpop.permute.xlu0 %1370
  %v1373 = vmul.f32 %v1366, %v1371
  %1375 = vrot.lane.b32.xlu0 %v1373, 32
  %v1376 = vpop.permute.xlu0 %1375
  %v1378 = vadd.f32 %v1368, %v1376
  %v1379 = vtanh.pop %v1378
  %1381 = vrot.lane.b32.xlu0 %v1379, 64
  %v1382 = vpop.permute.xlu0 %1381
  %v1384 = vmul.f32 %v1366, %v1382
  %1386 = vrot.lane.b32.xlu0 %v1384, 32
  %v1387 = vpop.permute.xlu0 %1386
  %1389 = vst.msk [vmem:[#allocation2 + $0xc] sm:$0x1] %vm128, %v1387
  %s1390 = sld [smem:[#allocation4 + $0xd]]
  %s1391 = scalar_lea.vmem %s1, %s1390
  %v1392 = vld [vmem:[%s1391] sm:$0x1]
  %v1393 = vsel %vm25, %v1387, 0
  %1395 = vmatprep.subr.mxu0 0.0
  %1396 = vmatpush1.msra.mxu0 %v18
  %1397 = vmatprep.subr.mxu0 0.0
  %1398 = vmatpush1.msra.mxu0 %v19
  %1399 = vmatprep.subr.mxu0 0.0
  %1400 = vmatpush1.msra.mxu0 %v20
  %1401 = vmatprep.subr.mxu0 0.0
  %1402 = vmatpush1.msra.mxu0 %v21
  %1403 = vmatprep.subr.mxu0 0.0
  %1404 = vmatpush1.msra.mxu0 0.0
  %1405 = vmatprep.subr.mxu0 0.0
  %1406 = vmatpush1.msra.mxu0 0.0
  %1407 = vmatprep.subr.mxu0 0.0
  %1408 = vmatpush1.msra.mxu0 0.0
  %1409 = vmatprep.subr.mxu0 0.0
  %1410 = vmatpush1.msra.mxu0 0.0
  %1411 = vmatprep.subr.mxu0 0.0
  %1412 = vmatpush1.msra.mxu0 0.0
  %1413 = vmatprep.subr.mxu0 0.0
  %1414 = vmatpush1.msra.mxu0 0.0
  %1415 = vmatprep.subr.mxu0 0.0
  %1416 = vmatpush1.msra.mxu0 0.0
  %1417 = vmatprep.subr.mxu0 0.0
  %1418 = vmatpush1.msra.mxu0 0.0
  %1419 = vmatprep.subr.mxu0 0.0
  %1420 = vmatpush1.msra.mxu0 0.0
  %1421 = vmatprep.subr.mxu0 0.0
  %1422 = vmatpush1.msra.mxu0 0.0
  %1423 = vmatprep.subr.mxu0 0.0
  %1424 = vmatpush1.msra.mxu0 0.0
  %1425 = vmatprep.subr.mxu0 0.0
  %1426 = vmatpush1.msra.mxu0 0.0
  %1427 = vmatprep.subr.mxu0 0.0
  %1428 = vmatpush1.msra.mxu0 0.0
  %1429 = vmatprep.subr.mxu0 0.0
  %1430 = vmatpush1.msra.mxu0 0.0
  %1431 = vmatprep.subr.mxu0 0.0
  %1432 = vmatpush1.msra.mxu0 0.0
  %1433 = vmatprep.subr.mxu0 0.0
  %1434 = vmatpush1.msra.mxu0 0.0
  %1435 = vmatprep.subr.mxu0 0.0
  %1436 = vmatpush1.msra.mxu0 0.0
  %1437 = vmatprep.subr.mxu0 0.0
  %1438 = vmatpush1.msra.mxu0 0.0
  %1439 = vmatprep.subr.mxu0 0.0
  %1440 = vmatpush1.msra.mxu0 0.0
  %1441 = vmatprep.subr.mxu0 0.0
  %1442 = vmatpush1.msra.mxu0 0.0
  %1443 = vmatprep.subr.mxu0 0.0
  %1444 = vmatpush1.msra.mxu0 0.0
  %1445 = vmatprep.subr.mxu0 0.0
  %1446 = vmatpush1.msra.mxu0 0.0
  %1447 = vmatprep.subr.mxu0 0.0
  %1448 = vmatpush1.msra.mxu0 0.0
  %1449 = vmatprep.subr.mxu0 0.0
  %1450 = vmatpush1.msra.mxu0 0.0
  %1451 = vmatprep.subr.mxu0 0.0
  %1452 = vmatpush1.msra.mxu0 0.0
  %1453 = vmatprep.subr.mxu0 0.0
  %1454 = vmatpush1.msra.mxu0 0.0
  %1455 = vmatprep.subr.mxu0 0.0
  %1456 = vmatpush1.msra.mxu0 0.0
  %1457 = vmatprep.subr.mxu0 0.0
  %1458 = vmatpush1.msra.mxu0 0.0
  %1459 = vmatprep.mubr.f32.mxu0 0.0
  %1460 = vmatmul.mubr.f32.gmra.mrb[0].mxu0 %v1393
  %v1461 = vpop.f32.mrb[0].mxu0
  %v1462 = vadd.f32 0.0, %v1461
  %v1463 = vpop.f32.mrb[0].mxu0
  %1464 = vdwg.mxu0
  %v1465 = vadd.f32 %v1392, %v1462
  %v1466 = vxor.u32 %v1465, 2147483648
  %v1467 = vmul.f32 %v1466, 1.442695
  %v1468 = vpow.pop %v1467
  %v1469 = vadd.f32 %v1468, 1.0
  %v1470 = vrcp.pop %v1469
  %v1471 = vmul.f32 1.0, %v1470
  %v1472 = vtanh.pop %v1465
  %v1473 = vmul.f32 %v1471, %v1378
  %1475 = vrot.lane.b32.xlu0 %v1472, 64
  %v1476 = vpop.permute.xlu0 %1475
  %v1478 = vmul.f32 %v1471, %v1476
  %1480 = vrot.lane.b32.xlu0 %v1478, 32
  %v1481 = vpop.permute.xlu0 %1480
  %v1483 = vadd.f32 %v1473, %v1481
  %v1484 = vtanh.pop %v1483
  %1486 = vrot.lane.b32.xlu0 %v1484, 64
  %v1487 = vpop.permute.xlu0 %1486
  %v1489 = vmul.f32 %v1471, %v1487
  %1491 = vrot.lane.b32.xlu0 %v1489, 32
  %v1492 = vpop.permute.xlu0 %1491
  %1494 = vst.msk [vmem:[#allocation2 + $0xd] sm:$0x1] %vm128, %v1492
  %s1495 = sld [smem:[#allocation4 + $0xe]]
  %s1496 = scalar_lea.vmem %s1, %s1495
  %v1497 = vld [vmem:[%s1496] sm:$0x1]
  %v1498 = vsel %vm25, %v1492, 0
  %1500 = vmatprep.subr.mxu0 0.0
  %1501 = vmatpush1.msra.mxu0 %v18
  %1502 = vmatprep.subr.mxu0 0.0
  %1503 = vmatpush1.msra.mxu0 %v19
  %1504 = vmatprep.subr.mxu0 0.0
  %1505 = vmatpush1.msra.mxu0 %v20
  %1506 = vmatprep.subr.mxu0 0.0
  %1507 = vmatpush1.msra.mxu0 %v21
  %1508 = vmatprep.subr.mxu0 0.0
  %1509 = vmatpush1.msra.mxu0 0.0
  %1510 = vmatprep.subr.mxu0 0.0
  %1511 = vmatpush1.msra.mxu0 0.0
  %1512 = vmatprep.subr.mxu0 0.0
  %1513 = vmatpush1.msra.mxu0 0.0
  %1514 = vmatprep.subr.mxu0 0.0
  %1515 = vmatpush1.msra.mxu0 0.0
  %1516 = vmatprep.subr.mxu0 0.0
  %1517 = vmatpush1.msra.mxu0 0.0
  %1518 = vmatprep.subr.mxu0 0.0
  %1519 = vmatpush1.msra.mxu0 0.0
  %1520 = vmatprep.subr.mxu0 0.0
  %1521 = vmatpush1.msra.mxu0 0.0
  %1522 = vmatprep.subr.mxu0 0.0
  %1523 = vmatpush1.msra.mxu0 0.0
  %1524 = vmatprep.subr.mxu0 0.0
  %1525 = vmatpush1.msra.mxu0 0.0
  %1526 = vmatprep.subr.mxu0 0.0
  %1527 = vmatpush1.msra.mxu0 0.0
  %1528 = vmatprep.subr.mxu0 0.0
  %1529 = vmatpush1.msra.mxu0 0.0
  %1530 = vmatprep.subr.mxu0 0.0
  %1531 = vmatpush1.msra.mxu0 0.0
  %1532 = vmatprep.subr.mxu0 0.0
  %1533 = vmatpush1.msra.mxu0 0.0
  %1534 = vmatprep.subr.mxu0 0.0
  %1535 = vmatpush1.msra.mxu0 0.0
  %1536 = vmatprep.subr.mxu0 0.0
  %1537 = vmatpush1.msra.mxu0 0.0
  %1538 = vmatprep.subr.mxu0 0.0
  %1539 = vmatpush1.msra.mxu0 0.0
  %1540 = vmatprep.subr.mxu0 0.0
  %1541 = vmatpush1.msra.mxu0 0.0
  %1542 = vmatprep.subr.mxu0 0.0
  %1543 = vmatpush1.msra.mxu0 0.0
  %1544 = vmatprep.subr.mxu0 0.0
  %1545 = vmatpush1.msra.mxu0 0.0
  %1546 = vmatprep.subr.mxu0 0.0
  %1547 = vmatpush1.msra.mxu0 0.0
  %1548 = vmatprep.subr.mxu0 0.0
  %1549 = vmatpush1.msra.mxu0 0.0
  %1550 = vmatprep.subr.mxu0 0.0
  %1551 = vmatpush1.msra.mxu0 0.0
  %1552 = vmatprep.subr.mxu0 0.0
  %1553 = vmatpush1.msra.mxu0 0.0
  %1554 = vmatprep.subr.mxu0 0.0
  %1555 = vmatpush1.msra.mxu0 0.0
  %1556 = vmatprep.subr.mxu0 0.0
  %1557 = vmatpush1.msra.mxu0 0.0
  %1558 = vmatprep.subr.mxu0 0.0
  %1559 = vmatpush1.msra.mxu0 0.0
  %1560 = vmatprep.subr.mxu0 0.0
  %1561 = vmatpush1.msra.mxu0 0.0
  %1562 = vmatprep.subr.mxu0 0.0
  %1563 = vmatpush1.msra.mxu0 0.0
  %1564 = vmatprep.mubr.f32.mxu0 0.0
  %1565 = vmatmul.mubr.f32.gmra.mrb[0].mxu0 %v1498
  %v1566 = vpop.f32.mrb[0].mxu0
  %v1567 = vadd.f32 0.0, %v1566
  %v1568 = vpop.f32.mrb[0].mxu0
  %1569 = vdwg.mxu0
  %v1570 = vadd.f32 %v1497, %v1567
  %v1571 = vxor.u32 %v1570, 2147483648
  %v1572 = vmul.f32 %v1571, 1.442695
  %v1573 = vpow.pop %v1572
  %v1574 = vadd.f32 %v1573, 1.0
  %v1575 = vrcp.pop %v1574
  %v1576 = vmul.f32 1.0, %v1575
  %v1577 = vtanh.pop %v1570
  %v1578 = vmul.f32 %v1576, %v1483
  %1580 = vrot.lane.b32.xlu0 %v1577, 64
  %v1581 = vpop.permute.xlu0 %1580
  %v1583 = vmul.f32 %v1576, %v1581
  %1585 = vrot.lane.b32.xlu0 %v1583, 32
  %v1586 = vpop.permute.xlu0 %1585
  %v1588 = vadd.f32 %v1578, %v1586
  %v1589 = vtanh.pop %v1588
  %1591 = vrot.lane.b32.xlu0 %v1589, 64
  %v1592 = vpop.permute.xlu0 %1591
  %v1594 = vmul.f32 %v1576, %v1592
  %1596 = vrot.lane.b32.xlu0 %v1594, 32
  %v1597 = vpop.permute.xlu0 %1596
  %1599 = vst.msk [vmem:[#allocation2 + $0xe] sm:$0x1] %vm128, %v1597
  %s1600 = sld [smem:[#allocation4 + $0xf]]
  %s1601 = scalar_lea.vmem %s1, %s1600
  %v1602 = vld [vmem:[%s1601] sm:$0x1]
  %v1603 = vsel %vm25, %v1597, 0
  %1605 = vmatprep.subr.mxu0 0.0
  %1606 = vmatpush1.msra.mxu0 %v18
  %1607 = vmatprep.subr.mxu0 0.0
  %1608 = vmatpush1.msra.mxu0 %v19
  %1609 = vmatprep.subr.mxu0 0.0
  %1610 = vmatpush1.msra.mxu0 %v20
  %1611 = vmatprep.subr.mxu0 0.0
  %1612 = vmatpush1.msra.mxu0 %v21
  %1613 = vmatprep.subr.mxu0 0.0
  %1614 = vmatpush1.msra.mxu0 0.0
  %1615 = vmatprep.subr.mxu0 0.0
  %1616 = vmatpush1.msra.mxu0 0.0
  %1617 = vmatprep.subr.mxu0 0.0
  %1618 = vmatpush1.msra.mxu0 0.0
  %1619 = vmatprep.subr.mxu0 0.0
  %1620 = vmatpush1.msra.mxu0 0.0
  %1621 = vmatprep.subr.mxu0 0.0
  %1622 = vmatpush1.msra.mxu0 0.0
  %1623 = vmatprep.subr.mxu0 0.0
  %1624 = vmatpush1.msra.mxu0 0.0
  %1625 = vmatprep.subr.mxu0 0.0
  %1626 = vmatpush1.msra.mxu0 0.0
  %1627 = vmatprep.subr.mxu0 0.0
  %1628 = vmatpush1.msra.mxu0 0.0
  %1629 = vmatprep.subr.mxu0 0.0
  %1630 = vmatpush1.msra.mxu0 0.0
  %1631 = vmatprep.subr.mxu0 0.0
  %1632 = vmatpush1.msra.mxu0 0.0
  %1633 = vmatprep.subr.mxu0 0.0
  %1634 = vmatpush1.msra.mxu0 0.0
  %1635 = vmatprep.subr.mxu0 0.0
  %1636 = vmatpush1.msra.mxu0 0.0
  %1637 = vmatprep.subr.mxu0 0.0
  %1638 = vmatpush1.msra.mxu0 0.0
  %1639 = vmatprep.subr.mxu0 0.0
  %1640 = vmatpush1.msra.mxu0 0.0
  %1641 = vmatprep.subr.mxu0 0.0
  %1642 = vmatpush1.msra.mxu0 0.0
  %1643 = vmatprep.subr.mxu0 0.0
  %1644 = vmatpush1.msra.mxu0 0.0
  %1645 = vmatprep.subr.mxu0 0.0
  %1646 = vmatpush1.msra.mxu0 0.0
  %1647 = vmatprep.subr.mxu0 0.0
  %1648 = vmatpush1.msra.mxu0 0.0
  %1649 = vmatprep.subr.mxu0 0.0
  %1650 = vmatpush1.msra.mxu0 0.0
  %1651 = vmatprep.subr.mxu0 0.0
  %1652 = vmatpush1.msra.mxu0 0.0
  %1653 = vmatprep.subr.mxu0 0.0
  %1654 = vmatpush1.msra.mxu0 0.0
  %1655 = vmatprep.subr.mxu0 0.0
  %1656 = vmatpush1.msra.mxu0 0.0
  %1657 = vmatprep.subr.mxu0 0.0
  %1658 = vmatpush1.msra.mxu0 0.0
  %1659 = vmatprep.subr.mxu0 0.0
  %1660 = vmatpush1.msra.mxu0 0.0
  %1661 = vmatprep.subr.mxu0 0.0
  %1662 = vmatpush1.msra.mxu0 0.0
  %1663 = vmatprep.subr.mxu0 0.0
  %1664 = vmatpush1.msra.mxu0 0.0
  %1665 = vmatprep.subr.mxu0 0.0
  %1666 = vmatpush1.msra.mxu0 0.0
  %1667 = vmatprep.subr.mxu0 0.0
  %1668 = vmatpush1.msra.mxu0 0.0
  %1669 = vmatprep.mubr.f32.mxu0 0.0
  %1670 = vmatmul.mubr.f32.gmra.mrb[0].mxu0 %v1603
  %v1671 = vpop.f32.mrb[0].mxu0
  %v1672 = vadd.f32 0.0, %v1671
  %v1673 = vpop.f32.mrb[0].mxu0
  %1674 = vdwg.mxu0
  %v1675 = vadd.f32 %v1602, %v1672
  %v1676 = vxor.u32 %v1675, 2147483648
  %v1677 = vmul.f32 %v1676, 1.442695
  %v1678 = vpow.pop %v1677
  %v1679 = vadd.f32 %v1678, 1.0
  %v1680 = vrcp.pop %v1679
  %v1681 = vmul.f32 1.0, %v1680
  %v1682 = vtanh.pop %v1675
  %v1683 = vmul.f32 %v1681, %v1588
  %1685 = vrot.lane.b32.xlu0 %v1682, 64
  %v1686 = vpop.permute.xlu0 %1685
  %v1688 = vmul.f32 %v1681, %v1686
  %1690 = vrot.lane.b32.xlu0 %v1688, 32
  %v1691 = vpop.permute.xlu0 %1690
  %v1693 = vadd.f32 %v1683, %v1691
  %v1694 = vtanh.pop %v1693
  %1696 = vrot.lane.b32.xlu0 %v1694, 64
  %v1697 = vpop.permute.xlu0 %1696
  %v1699 = vmul.f32 %v1681, %v1697
  %1701 = vrot.lane.b32.xlu0 %v1699, 32
  %v1702 = vpop.permute.xlu0 %1701
  %1704 = vst.msk [vmem:[#allocation2 + $0xf] sm:$0x1] %vm128, %v1702
  %v1705 = vld [vmem:[#allocation2] sm:$0xff]
  %v1706 = vld [vmem:[#allocation2 + $0x8] sm:$0xff]
  %v1707 = vld [vmem:[%s2] sm:$0xff]
  %v1708 = vld [vmem:[%s2 + $0x8] sm:$0xff]
  %v1709 = vld [vmem:[%s2 + $0x10] sm:$0xff]
  %v1710 = vld [vmem:[%s2 + $0x18] sm:$0xff]
  %v1711 = vld [vmem:[%s2 + $0x20] sm:$0x1]
  %v1712 = vlaneseq
  %v1713 = vshrl.u32 %v1712, 7
  %v1714 = vsub.s32 0, %v1713
  %v1715 = vrot.slane %v1711, %v1714
  %v1717 = vsel %vm25, %v1705, 0
  %v1720 = vsel %vm25, %v1706, 0
  %1722 = vmatprep.subr.mxu0 0.0
  %1723 = vmatpush1.msra.mxu0 %v1707
  %1724 = vmatprep.subr.mxu0 0.0
  %1725 = vmatpush1.msra.mxu0 %v1708
  %1726 = vmatprep.subr.mxu0 0.0
  %1727 = vmatpush1.msra.mxu0 %v1709
  %1728 = vmatprep.subr.mxu0 0.0
  %1729 = vmatpush1.msra.mxu0 %v1710
  %1730 = vmatprep.subr.mxu0 0.0
  %1731 = vmatpush1.msra.mxu0 0.0
  %1732 = vmatprep.subr.mxu0 0.0
  %1733 = vmatpush1.msra.mxu0 0.0
  %1734 = vmatprep.subr.mxu0 0.0
  %1735 = vmatpush1.msra.mxu0 0.0
  %1736 = vmatprep.subr.mxu0 0.0
  %1737 = vmatpush1.msra.mxu0 0.0
  %1738 = vmatprep.subr.mxu0 0.0
  %1739 = vmatpush1.msra.mxu0 0.0
  %1740 = vmatprep.subr.mxu0 0.0
  %1741 = vmatpush1.msra.mxu0 0.0
  %1742 = vmatprep.subr.mxu0 0.0
  %1743 = vmatpush1.msra.mxu0 0.0
  %1744 = vmatprep.subr.mxu0 0.0
  %1745 = vmatpush1.msra.mxu0 0.0
  %1746 = vmatprep.subr.mxu0 0.0
  %1747 = vmatpush1.msra.mxu0 0.0
  %1748 = vmatprep.subr.mxu0 0.0
  %1749 = vmatpush1.msra.mxu0 0.0
  %1750 = vmatprep.subr.mxu0 0.0
  %1751 = vmatpush1.msra.mxu0 0.0
  %1752 = vmatprep.subr.mxu0 0.0
  %1753 = vmatpush1.msra.mxu0 0.0
  %1754 = vmatprep.subr.mxu0 0.0
  %1755 = vmatpush1.msra.mxu0 0.0
  %1756 = vmatprep.subr.mxu0 0.0
  %1757 = vmatpush1.msra.mxu0 0.0
  %1758 = vmatprep.subr.mxu0 0.0
  %1759 = vmatpush1.msra.mxu0 0.0
  %1760 = vmatprep.subr.mxu0 0.0
  %1761 = vmatpush1.msra.mxu0 0.0
  %1762 = vmatprep.subr.mxu0 0.0
  %1763 = vmatpush1.msra.mxu0 0.0
  %1764 = vmatprep.subr.mxu0 0.0
  %1765 = vmatpush1.msra.mxu0 0.0
  %1766 = vmatprep.subr.mxu0 0.0
  %1767 = vmatpush1.msra.mxu0 0.0
  %1768 = vmatprep.subr.mxu0 0.0
  %1769 = vmatpush1.msra.mxu0 0.0
  %1770 = vmatprep.subr.mxu0 0.0
  %1771 = vmatpush1.msra.mxu0 0.0
  %1772 = vmatprep.subr.mxu0 0.0
  %1773 = vmatpush1.msra.mxu0 0.0
  %1774 = vmatprep.subr.mxu0 0.0
  %1775 = vmatpush1.msra.mxu0 0.0
  %1776 = vmatprep.subr.mxu0 0.0
  %1777 = vmatpush1.msra.mxu0 0.0
  %1778 = vmatprep.subr.mxu0 0.0
  %1779 = vmatpush1.msra.mxu0 0.0
  %1780 = vmatprep.subr.mxu0 0.0
  %1781 = vmatpush1.msra.mxu0 0.0
  %1782 = vmatprep.subr.mxu0 0.0
  %1783 = vmatpush1.msra.mxu0 0.0
  %1784 = vmatprep.subr.mxu0 0.0
  %1785 = vmatpush1.msra.mxu0 0.0
  %1786 = vmatprep.mubr.f32.mxu0 0.0
  %1787 = vmatmul.mubr.f32.gmra.mrb[0].mxu0 %v1717
  %v1788 = vpop.f32.mrb[0].mxu0
  %v1789 = vadd.f32 %v1715, %v1788
  %v1790 = vpop.f32.mrb[0].mxu0
  %1791 = vmatprep.mubr.f32.mxu0 0.0
  %1792 = vmatmul.mubr.f32.gmra.mrb[0].mxu0 %v1720
  %v1793 = vpop.f32.mrb[0].mxu0
  %v1794 = vadd.f32 %v1715, %v1793
  %v1795 = vpop.f32.mrb[0].mxu0
  %1796 = vdwg.mxu0
  %vm1797 = vcmask 39936
  %v1798 = vsel %vm1797, %v1789, -inf
  %1799 = vmax.xlane.f32.xlu0 %v1798
  %v1800 = vpop.xlane.xlu0 %1799
  %v1801 = vsel %vm1797, %v1794, -inf
  %1802 = vmax.xlane.f32.xlu0 %v1801
  %v1803 = vpop.xlane.xlu0 %1802
  %v1804 = vsub.f32 %v1789, %v1800
  %v1805 = vsub.f32 %v1794, %v1803
  %v1806 = vmul.f32 %v1804, 1.442695
  %v1807 = vpow.pop %v1806
  %v1808 = vmul.f32 %v1805, 1.442695
  %v1809 = vpow.pop %v1808
  %v1810 = vsel %vm1797, %v1807, 0.0
  %1811 = vadd.xlane.f32.xlu0 %v1810
  %v1812 = vpop.xlane.xlu0 %1811
  %v1813 = vsel %vm1797, %v1809, 0.0
  %1814 = vadd.xlane.f32.xlu0 %v1813
  %v1815 = vpop.xlane.xlu0 %1814
  %v1816 = vlog2.pop %v1812
  %v1817 = vmul.f32 %v1816, 0.6931472
  %v1818 = vlog2.pop %v1815
  %v1819 = vmul.f32 %v1818, 0.6931472
  %v1820 = vsub.f32 %v1804, %v1817
  %v1821 = vsub.f32 %v1805, %v1819
  %1822 = vst.msk [vmem:[%s3] sm:$0xff] %vm1797, %v1820
  %1823 = vst.msk [vmem:[%s3 + $0x8] sm:$0xff] %vm1797, %v1821
  // Predicated region
  $region10: #{net_forward.1} parent=0 // pred_check
    _
  $region11: #{net_forward.1} parent=0 // pred_check_branch
    %1825 = sbr.rel (0) target = $region13
  $region12: #{net_forward.1} parent=0 // pred_region
    _
  $region13: #{net_forward.1} parent=0 // pred_fallthru
    _
  // Predicated region
  $region14: #{net_forward.1} parent=0 // pred_check
    _
  $region15: #{net_forward.1} parent=0 // pred_check_branch
    %1827 = sbr.rel (0) target = $region17
  $region16: #{net_forward.1} parent=0 // pred_region
    _
  $region17: #{net_forward.1} parent=0 // pred_fallthru
    _

</llo_original>
